<compile_context>
chip_gen: v7x
topology: tpu7x:2x2x1
jax: 0.10.0
libtpu: 0.0.40
codegen_flags: <defaults>
</compile_context>

<pallas_src>
import jax
import jax.numpy as jnp
from jax.experimental import pallas as pl
from jax.experimental.pallas import tpu as pltpu


def _round_up(x, m):
    return ((x + m - 1) // m) * m


def _tpu_vmem_and_cores():
    """Best-effort query of physical VMEM bytes and TensorCore count.

    Falls back to conservative values (64 MiB, 1 TC) if the query is unavailable,
    so tiling stays safe on any generation."""
    vmem_bytes = 64 << 20
    num_tc = 1
    try:
        info = pltpu.get_tpu_info()
        vmem_bytes = int(getattr(info, "vmem_capacity_bytes", vmem_bytes))
        for name in ("num_tensorcores", "tensorcore_count", "num_cores", "core_count"):
            v = getattr(info, name, None)
            if v:
                num_tc = int(v)
                break
    except Exception:
        pass
    return vmem_bytes, num_tc


def _make_kernel(num_hidden, matmul_dtype, has_edge, dfeat_p):
    """Kernel body: hidden (Linear+ReLU) chain + fused feat|edge projection."""

    def kernel(thrd_ref, x_ref, *refs):
        n_out = 2 if has_edge else 1
        param_refs = refs[:-n_out]
        feat_ref = refs[-n_out]
        edge_ref = refs[-1] if has_edge else None

        h = x_ref[...]                       # already in matmul dtype (f32 or bf16)
        idx = 0
        for _ in range(num_hidden):
            w = param_refs[idx][...]
            b = param_refs[idx + 1][...]
            idx += 2
            h = jnp.maximum(
                jnp.dot(h.astype(matmul_dtype), w,
                        preferred_element_type=jnp.float32) + b,
                0.0,
            )

        # One MXU matmul produces [feat | edge] columns; LHS push of h is reused.
        w_c = param_refs[idx][...]
        b_c = param_refs[idx + 1][...]
        y = jnp.dot(h.astype(matmul_dtype), w_c,
                    preferred_element_type=jnp.float32) + b_c

        # Static, 128-aligned column slices -> lane-dense stores, no iota / full-width select.
        feat_ref[...] = y[:, :dfeat_p].astype(feat_ref.dtype)
        if has_edge:
            thrd = thrd_ref[0]                               # scalar threshold from SMEM
            e = y[:, dfeat_p:]                               # 128-lane edge block only
            edge_ref[...] = jnp.where(e > thrd, 1.0, 0.0).astype(edge_ref.dtype)

    return kernel


def pack_params(params, *, use_bf16_matmul=False):
    """Fuse feat/edge projections (each padded to a lane multiple) and cast once.

    Call once and reuse across forwards; graph_trojan_net_forward also accepts
    raw params and packs internally."""
    hidden = params["hidden"]
    w_feat, b_feat = params["feat"]
    w_edge, b_edge = params["edge"]
    nfeat = int(w_feat.shape[0])
    dfeat = int(w_feat.shape[1])
    dedge = int(w_edge.shape[1])

    dfeat_p = _round_up(max(dfeat, 1), 128)
    dedge_p = _round_up(dedge, 128) if dedge > 0 else 0
    d_comb = dfeat_p + dedge_p
    matmul_dtype = jnp.bfloat16 if use_bf16_matmul else jnp.float32

    w_comb = jnp.zeros((nfeat, d_comb), jnp.float32)
    w_comb = w_comb.at[:, :dfeat].set(w_feat)
    b_comb = jnp.zeros((1, d_comb), jnp.float32)
    b_comb = b_comb.at[:, :dfeat].set(b_feat)
    if dedge > 0:
        w_comb = w_comb.at[:, dfeat_p:dfeat_p + dedge].set(w_edge)
        b_comb = b_comb.at[:, dfeat_p:dfeat_p + dedge].set(b_edge)

    flat = []
    for w, b in hidden:
        flat += [jnp.asarray(w, matmul_dtype), jnp.asarray(b, jnp.float32)]
    flat += [jnp.asarray(w_comb, matmul_dtype), jnp.asarray(b_comb, jnp.float32)]

    return {
        "flat": flat,
        "num_hidden": len(hidden),
        "nfeat": nfeat,
        "dfeat": dfeat,
        "dedge": dedge,
        "dfeat_p": dfeat_p,
        "dedge_p": dedge_p,
        "matmul_dtype": matmul_dtype,
    }


def graph_trojan_net_forward(x, params, thrd, *, tm=512, use_bf16_matmul=False,
                             out_dtype=jnp.float32, num_tensorcores=None,
                             vmem_budget_bytes=None):
    """Pallas-backed forward pass.

    x      : [N, nfeat]
    params : raw dict ({"hidden": [(w,b)...], "feat": (w,b), "edge": (w,b)},
             weights [in,out], biases [1,out]) or a pack_params() result.
    thrd   : scalar threshold for the edge GradWhere.
    """
    if "flat" not in params:
        params = pack_params(params, use_bf16_matmul=use_bf16_matmul)

    flat_params = params["flat"]
    num_hidden = params["num_hidden"]
    nfeat = params["nfeat"]
    dfeat, dedge = params["dfeat"], params["dedge"]
    dfeat_p, dedge_p = params["dfeat_p"], params["dedge_p"]
    matmul_dtype = params["matmul_dtype"]
    has_edge = dedge > 0

    N = x.shape[0]
    assert x.shape[1] == nfeat

    # bf16 matmul path ships the input as bf16 (half the DMA + VMEM for the x tile).
    x_in = jnp.asarray(x, matmul_dtype)
    x_itemsize = jnp.dtype(matmul_dtype).itemsize
    feat_itemsize = jnp.dtype(out_dtype).itemsize

    vmem_phys, detected_tc = _tpu_vmem_and_cores()
    num_tc = detected_tc if num_tensorcores is None else int(num_tensorcores)
    if vmem_budget_bytes is None:
        # ~40 MiB on 64 MiB parts (v7x), ~100 MiB on 128 MiB parts (v5e/v6e).
        vmem_budget_bytes = max(24 << 20, min(vmem_phys - (24 << 20), 100 << 20))

    param_bytes = sum(int(a.size) * a.dtype.itemsize for a in flat_params)

    def tile_bytes(t):
        out_b = dfeat_p * feat_itemsize + dedge_p * 4
        return 2 * t * nfeat * x_itemsize + 2 * t * out_b   # double-buffered in + out tiles

    # --- row tile selection ---------------------------------------------------
    tm = max(8, _round_up(min(int(tm), max(N, 1)), 8))
    while tm > 8 and tile_bytes(tm) + param_bytes > vmem_budget_bytes:
        tm = max(8, _round_up(tm // 2, 8))
    # Split rows into >=2 tiles only when the chip has >=2 TensorCores (v7x);
    # on single-TC v5e/v6e an extra grid step is pure overhead.
    if num_tc >= 2 and _round_up(N, tm) == tm and N > 8:
        tm = max(8, _round_up((N + num_tc - 1) // num_tc, 8))

    n_pad = _round_up(N, tm)
    if n_pad != N:
        x_in = jnp.pad(x_in, ((0, n_pad - N), (0, 0)))
    grid = (n_pad // tm,)

    # --- specs ----------------------------------------------------------------
    resident = pl.Buffered(1)   # grid-invariant params: single-buffered
    in_specs = [
        pl.BlockSpec(memory_space=pltpu.MemorySpace.SMEM),    # thrd scalar
        pl.BlockSpec((tm, nfeat), lambda i: (i, 0)),          # x rows tile
    ]
    for a in flat_params:
        in_specs.append(pl.BlockSpec(a.shape, lambda i: (0, 0), pipeline_mode=resident))

    out_specs = [pl.BlockSpec((tm, dfeat_p), lambda i: (i, 0))]
    out_shape = [jax.ShapeDtypeStruct((n_pad, dfeat_p), out_dtype)]
    if has_edge:
        out_specs.append(pl.BlockSpec((tm, dedge_p), lambda i: (i, 0)))
        out_shape.append(jax.ShapeDtypeStruct((n_pad, dedge_p), jnp.float32))

    footprint = tile_bytes(tm) + param_bytes
    vmem_limit = int(min(max(vmem_phys - (8 << 20), 16 << 20),
                         max(16 << 20, footprint + (4 << 20))))
    semantics = (pltpu.CORE_PARALLEL,) if num_tc >= 2 else ("parallel",)

    fn = pl.pallas_call(
        _make_kernel(num_hidden, matmul_dtype, has_edge, dfeat_p),
        grid=grid,
        in_specs=in_specs,
        out_specs=out_specs,
        out_shape=out_shape,
        compiler_params=pltpu.CompilerParams(
            dimension_semantics=semantics,
            vmem_limit_bytes=vmem_limit,
        ),
    )

    thrd_arr = jnp.asarray([thrd], dtype=jnp.float32)
    outs = fn(thrd_arr, x_in, *flat_params)

    feat_packed = outs[0]
    feat = feat_packed[:N, :dfeat]
    if has_edge:
        edge_weight = outs[1][:N, :dedge]
    else:
        edge_weight = jnp.zeros((N, 0), jnp.float32)
    return feat, edge_weight


def init_params(key, nfeat, nout, layernum=1):
    """Deterministic init mimicking nn.Linear (uniform +/- 1/sqrt(fan_in))."""

    def linear(k, fan_in, fan_out):
        kw, kb = jax.random.split(k)
        bound = 1.0 / jnp.sqrt(float(fan_in))
        w = jax.random.uniform(kw, (fan_in, fan_out), jnp.float32, -bound, bound)
        b = jax.random.uniform(kb, (1, fan_out), jnp.float32, -bound, bound)
        return w, b

    keys = jax.random.split(key, (layernum - 1) + 2)
    hidden = [linear(keys[l], nfeat, nfeat) for l in range(layernum - 1)]
    feat = linear(keys[-2], nfeat, nout * nfeat)
    edge = linear(keys[-1], nfeat, int(nout * (nout - 1) / 2))
    return {"hidden": hidden, "feat": feat, "edge": edge}


def reference_forward(x, params, thrd):
    h = x
    for w, b in params["hidden"]:
        h = jnp.maximum(h @ w + b, 0.0)
    w_feat, b_feat = params["feat"]
    w_edge, b_edge = params["edge"]
    feat = h @ w_feat + b_feat
    e = h @ w_edge + b_edge
    edge_weight = jnp.where(e > thrd, 1.0, 0.0)
    return feat, edge_weight, e


if __name__ == "__main__":
    # Small but non-trivial shapes: 250 nodes (not a tile multiple) x 128 features.
    N, nfeat, nout, layernum = 250, 128, 4, 2   # layernum=2 -> one hidden Linear+ReLU
    thrd = 0.0

    key = jax.random.PRNGKey(0)
    k_x, k_p = jax.random.split(key)
    x = jax.random.normal(k_x, (N, nfeat), dtype=jnp.float32)
    raw_params = init_params(k_p, nfeat, nout, layernum=layernum)

    # Pack once (hoisted fused-weight construction), reuse across forwards.
    packed_params = pack_params(raw_params, use_bf16_matmul=False)

    feat, edge_weight = graph_trojan_net_forward(x, packed_params, thrd)
    feat = jax.block_until_ready(feat)
    edge_weight = jax.block_until_ready(edge_weight)

    feat_ref, edge_ref, e_ref = reference_forward(x, raw_params, thrd)
    assert feat.shape == (N, nout * nfeat)
    assert edge_weight.shape == (N, int(nout * (nout - 1) / 2))
    assert jnp.allclose(feat, feat_ref, atol=1e-4, rtol=1e-4)
    # Ignore edge logits numerically at the threshold (accumulation-order ties).
    decided = jnp.abs(e_ref - thrd) > 1e-4
    assert jnp.array_equal(jnp.where(decided, edge_weight, 0.0),
                           jnp.where(decided, edge_ref, 0.0))

    # Second forward reusing the same packed params (exercises the hoisted packing path).
    feat2, edge2 = graph_trojan_net_forward(x, packed_params, thrd)
    feat2 = jax.block_until_ready(feat2)
    assert jnp.allclose(feat2, feat, atol=0.0, rtol=0.0)

    # Exercise the bf16-operand path (v6e/v7x MXU fast path); loose sanity check only.
    feat_bf, edge_bf = graph_trojan_net_forward(x, raw_params, thrd, use_bf16_matmul=True)
    feat_bf = jax.block_until_ready(feat_bf)
    edge_bf = jax.block_until_ready(edge_bf)
    assert feat_bf.shape == feat_ref.shape and edge_bf.shape == edge_ref.shape
    assert bool(jnp.all(jnp.isfinite(feat_bf)))

    print("KERNEL_OK")
</pallas_src>

<mosaic_0001>
module attributes {stable_mosaic.version = 11 : i64} {
  func.func @kernel(%arg0: i32, %arg1: memref<1xf32, #tpu.memory_space<smem>>, %arg2: memref<256x128xf32, #tpu.memory_space<vmem>>, %arg3: memref<128x128xf32, #tpu.memory_space<vmem>>, %arg4: memref<1x128xf32, #tpu.memory_space<vmem>>, %arg5: memref<128x640xf32, #tpu.memory_space<vmem>>, %arg6: memref<1x640xf32, #tpu.memory_space<vmem>>, %arg7: memref<256x512xf32, #tpu.memory_space<vmem>>, %arg8: memref<256x128xf32, #tpu.memory_space<vmem>>) attributes {dimension_semantics = [#tpu.dimension_semantics<parallel>], iteration_bounds = array<i64: 1>, scalar_prefetch = 0 : i64, scratch_operands = 0 : i64, tpu.core_type = #tpu.core_type<tc>, window_params = [{transform_indices = @transform_0, window_bounds = array<i64: 1>}, {transform_indices = @transform_1, window_bounds = array<i64: 256, 128>}, {pipeline_mode = #tpu.pipeline_mode<synchronous>, transform_indices = @transform_2, window_bounds = array<i64: 128, 128>}, {pipeline_mode = #tpu.pipeline_mode<synchronous>, transform_indices = @transform_3, window_bounds = array<i64: 1, 128>}, {pipeline_mode = #tpu.pipeline_mode<synchronous>, transform_indices = @transform_4, window_bounds = array<i64: 128, 640>}, {pipeline_mode = #tpu.pipeline_mode<synchronous>, transform_indices = @transform_5, window_bounds = array<i64: 1, 640>}, {transform_indices = @transform_6, window_bounds = array<i64: 256, 512>}, {transform_indices = @transform_7, window_bounds = array<i64: 256, 128>}]} {
    %c0 = arith.constant 0 : index
    %c0_0 = arith.constant 0 : index
    %0 = vector.load %arg2[%c0, %c0_0] : memref<256x128xf32, #tpu.memory_space<vmem>>, vector<256x128xf32>
    %c0_1 = arith.constant 0 : index
    %c0_2 = arith.constant 0 : index
    %1 = vector.load %arg3[%c0_1, %c0_2] : memref<128x128xf32, #tpu.memory_space<vmem>>, vector<128x128xf32>
    %c0_3 = arith.constant 0 : index
    %c0_4 = arith.constant 0 : index
    %2 = vector.load %arg4[%c0_3, %c0_4] : memref<1x128xf32, #tpu.memory_space<vmem>>, vector<1x128xf32>
    %cst = arith.constant dense<0.000000e+00> : vector<256x128xf32>
    %3 = tpu.matmul %0, %1, %cst {dimension_numbers = #tpu.dot_dimension_numbers<[1], [0], [0], [1], [0, 0, 1, 1], [], []>} : vector<256x128xf32>, vector<128x128xf32>, vector<256x128xf32> -> vector<256x128xf32>
    %4 = vector.broadcast %2 : vector<1x128xf32> to vector<256x128xf32>
    %5 = arith.addf %3, %4 : vector<256x128xf32>
    %cst_5 = arith.constant 0.000000e+00 : f32
    %6 = vector.broadcast %cst_5 : f32 to vector<256x128xf32>
    %7 = arith.maximumf %5, %6 : vector<256x128xf32>
    %c0_6 = arith.constant 0 : index
    %c0_7 = arith.constant 0 : index
    %8 = vector.load %arg5[%c0_6, %c0_7] : memref<128x640xf32, #tpu.memory_space<vmem>>, vector<128x640xf32>
    %c0_8 = arith.constant 0 : index
    %c0_9 = arith.constant 0 : index
    %9 = vector.load %arg6[%c0_8, %c0_9] : memref<1x640xf32, #tpu.memory_space<vmem>>, vector<1x640xf32>
    %cst_10 = arith.constant dense<0.000000e+00> : vector<256x640xf32>
    %10 = tpu.matmul %7, %8, %cst_10 {dimension_numbers = #tpu.dot_dimension_numbers<[1], [0], [0], [1], [0, 0, 1, 1], [], []>} : vector<256x128xf32>, vector<128x640xf32>, vector<256x640xf32> -> vector<256x640xf32>
    %11 = vector.broadcast %9 : vector<1x640xf32> to vector<256x640xf32>
    %12 = arith.addf %10, %11 : vector<256x640xf32>
    %13 = vector.extract_strided_slice %12 {offsets = [0, 0], sizes = [256, 512], strides = [1, 1]} : vector<256x640xf32> to vector<256x512xf32>
    %c0_11 = arith.constant 0 : index
    %c0_12 = arith.constant 0 : index
    %14 = vector.load %arg7[%c0_11, %c0_12] : memref<256x512xf32, #tpu.memory_space<vmem>>, vector<256x512xf32>
    tpu.vector_store %arg7[%c0_11, %c0_12], %13 {strides = array<i32>} : memref<256x512xf32, #tpu.memory_space<vmem>>, vector<256x512xf32>,
    %c0_13 = arith.constant 0 : index
    %15 = memref.load %arg1[%c0_13] : memref<1xf32, #tpu.memory_space<smem>>
    %16 = vector.extract_strided_slice %12 {offsets = [0, 512], sizes = [256, 128], strides = [1, 1]} : vector<256x640xf32> to vector<256x128xf32>
    %17 = vector.broadcast %15 : f32 to vector<256x128xf32>
    %18 = arith.cmpf ogt, %16, %17 : vector<256x128xf32>
    %cst_14 = arith.constant 1.000000e+00 : f32
    %cst_15 = arith.constant 0.000000e+00 : f32
    %19 = vector.broadcast %cst_14 : f32 to vector<256x128xf32>
    %20 = vector.broadcast %cst_15 : f32 to vector<256x128xf32>
    %21 = arith.select %18, %19, %20 : vector<256x128xi1>, vector<256x128xf32>
    %c0_16 = arith.constant 0 : index
    %c0_17 = arith.constant 0 : index
    %22 = vector.load %arg8[%c0_16, %c0_17] : memref<256x128xf32, #tpu.memory_space<vmem>>, vector<256x128xf32>
    tpu.vector_store %arg8[%c0_16, %c0_17], %21 {strides = array<i32>} : memref<256x128xf32, #tpu.memory_space<vmem>>, vector<256x128xf32>,
    return
  }
  func.func @transform_0(%arg0: i32) -> i32 {
    %c0_i32 = arith.constant 0 : i32
    %c0_i32_0 = arith.constant 0 : i32
    return %c0_i32 : i32
  }
  func.func @transform_1(%arg0: i32) -> (i32, i32) {
    %c0_i32 = arith.constant 0 : i32
    %c0_i32_0 = arith.constant 0 : i32
    return %arg0, %c0_i32 : i32, i32
  }
  func.func @transform_2(%arg0: i32) -> (i32, i32) {
    %c0_i32 = arith.constant 0 : i32
    %c0_i32_0 = arith.constant 0 : i32
    %c0_i32_1 = arith.constant 0 : i32
    return %c0_i32, %c0_i32_0 : i32, i32
  }
  func.func @transform_3(%arg0: i32) -> (i32, i32) {
    %c0_i32 = arith.constant 0 : i32
    %c0_i32_0 = arith.constant 0 : i32
    %c0_i32_1 = arith.constant 0 : i32
    return %c0_i32, %c0_i32_0 : i32, i32
  }
  func.func @transform_4(%arg0: i32) -> (i32, i32) {
    %c0_i32 = arith.constant 0 : i32
    %c0_i32_0 = arith.constant 0 : i32
    %c0_i32_1 = arith.constant 0 : i32
    return %c0_i32, %c0_i32_0 : i32, i32
  }
  func.func @transform_5(%arg0: i32) -> (i32, i32) {
    %c0_i32 = arith.constant 0 : i32
    %c0_i32_0 = arith.constant 0 : i32
    %c0_i32_1 = arith.constant 0 : i32
    return %c0_i32, %c0_i32_0 : i32, i32
  }
  func.func @transform_6(%arg0: i32) -> (i32, i32) {
    %c0_i32 = arith.constant 0 : i32
    %c0_i32_0 = arith.constant 0 : i32
    return %arg0, %c0_i32 : i32, i32
  }
  func.func @transform_7(%arg0: i32) -> (i32, i32) {
    %c0_i32 = arith.constant 0 : i32
    %c0_i32_0 = arith.constant 0 : i32
    return %arg0, %c0_i32 : i32, i32
  }
}

</mosaic_0001>

<llo_original>
// kernel: tpu_custom_call.1
$region0: #{tpu_custom_call.1}
  #allocation0 [shape = 'u32[]', space=smem, size = 0x4, offset = 0x4, fixed_abs, tag = 'smem constant byte address 0x4 - core index']
  #allocation1 [shape = 'u32[144,128]{1,0:T(1,128)}', space=vmem, size = 0x12000, scoped, tag = 'internal scratch']
  #allocation2 [shape = 'f32[1]{0:T(128)S(6)}', space=smem, size = 0x200, scoped, tag = 'scoped memory for tpu_custom_call.1']
  %s0 = inlined_call_operand.<no memory space> [shape: f32[1], index: 0, kind: input, shape index: {}]
  %s1 = inlined_call_operand.hbm [shape: f32[256,128], index: 1, kind: input, shape index: {}]
  %s2 = inlined_call_operand.hbm [shape: f32[128,128], index: 2, kind: input, shape index: {}]
  %s3 = inlined_call_operand.vmem [shape: f32[1,128], index: 3, kind: input, shape index: {}]
  %s4 = inlined_call_operand.hbm [shape: f32[128,640], index: 4, kind: input, shape index: {}]
  %s5 = inlined_call_operand.vmem [shape: f32[1,640], index: 5, kind: input, shape index: {}]
  %s6 = inlined_call_operand.hbm [shape: f32[256,512], index: 6, kind: output, shape index: {0}]
  %s7 = inlined_call_operand.hbm [shape: f32[256,128], index: 7, kind: output, shape index: {1}]
  %8 = xla_tuple %s6, %s7
  %s9 = sld [smem:[#allocation0]]
  $region54: #{tpu_custom_call.1} parent=0
    _
  %s11 = ssub.s32 1, %s9
  %s12 = scalar_select 0, %s11, %s9
  %13 = sst [smem:[#allocation2]] %s0
  $region1: #{tpu_custom_call.1} parent=0
    #allocation3 [shape = 'u8[131072]{0}', space=vmem, size = 0x20000, scoped, tag = 'input window, operand 1, single buffered']
    #allocation4 [shape = 's32[1]{0}', space=sflag, size = 0x4, scoped, tag = 'scoped memory for tpu_custom_call.1']
    #allocation5 [shape = 's32[1]{0}', space=sflag, size = 0x4, scoped, tag = 'scoped memory for tpu_custom_call.1']
    #allocation6 [shape = 'u8[65536]{0}', space=vmem, size = 0x10000, scoped, tag = 'input window, operand 2, single buffered']
    #allocation7 [shape = 's32[1]{0}', space=sflag, size = 0x4, scoped, tag = 'scoped memory for tpu_custom_call.1']
    #allocation8 [shape = 'u8[327680]{0}', space=vmem, size = 0x50000, scoped, tag = 'input window, operand 4, single buffered']
    #allocation9 [shape = 'u8[524288]{0}', space=vmem, size = 0x80000, scoped, tag = 'output window, operand 0, single buffered']
    #allocation10 [shape = 'u8[131072]{0}', space=vmem, size = 0x20000, scoped, tag = 'output window, operand 1, single buffered']
    #allocation11 [shape = 's32[1]{0}', space=sflag, size = 0x4, scoped, tag = 'scoped memory for tpu_custom_call.1']
    %14 = vsyncpa [#allocation4], 0
    %15 = vsyncpa [#allocation7], 0
    %16 = vsyncpa [#allocation5], 0
    %17 = vsyncpa [#allocation11], 0
    // Predicated region
    $region2: #{tpu_custom_call.1} parent=1 // pred_check
      _
    $region3: #{tpu_custom_call.1} parent=1 // pred_check_branch
      %19 = sbr.rel (0) target = $region5
    $region4: #{tpu_custom_call.1} parent=1 // pred_region
      _
    $region5: #{tpu_custom_call.1} parent=1 // pred_fallthru
      _
    // Predicated region
    $region6: #{tpu_custom_call.1} parent=1 // pred_check
      _
    $region7: #{tpu_custom_call.1} parent=1 // pred_check_branch
      %21 = sbr.rel (0) target = $region9
    $region8: #{tpu_custom_call.1} parent=1 // pred_region
      %s23 = ssub.s32 4096, 4096
      %24 = vsyncadd [#allocation4], %s23
      %s25 = sshll.u32 [#allocation3], 4
      %s26 = int_to_ptr.vmem [resolvable:$true] %s25
      %31 = dma.hbm_to_vmem [thread:$0]  %s1, 4096, %s26, [#allocation4], 128, 128, 8
    $region9: #{tpu_custom_call.1} parent=1 // pred_fallthru
      _
    // Predicated region
    $region10: #{tpu_custom_call.1} parent=1 // pred_check
      _
    $region11: #{tpu_custom_call.1} parent=1 // pred_check_branch
      %33 = sbr.rel (0) target = $region13
    $region12: #{tpu_custom_call.1} parent=1 // pred_region
      %s35 = ssub.s32 2048, 2048
      %36 = vsyncadd [#allocation7], %s35
      %s37 = sshll.u32 [#allocation6], 4
      %s38 = int_to_ptr.vmem [resolvable:$true] %s37
      %43 = dma.hbm_to_vmem [thread:$0]  %s2, 2048, %s38, [#allocation7], 128, 128, 8
    $region13: #{tpu_custom_call.1} parent=1 // pred_fallthru
      _
    // Predicated region
    $region14: #{tpu_custom_call.1} parent=1 // pred_check
      _
    $region15: #{tpu_custom_call.1} parent=1 // pred_check_branch
      %45 = sbr.rel (0) target = $region17
    $region16: #{tpu_custom_call.1} parent=1 // pred_region
      _
    $region17: #{tpu_custom_call.1} parent=1 // pred_fallthru
      _
    // Predicated region
    $region18: #{tpu_custom_call.1} parent=1 // pred_check
      _
    $region19: #{tpu_custom_call.1} parent=1 // pred_check_branch
      %47 = sbr.rel (0) target = $region21
    $region20: #{tpu_custom_call.1} parent=1 // pred_region
      %s49 = ssub.s32 10240, 10240
      %50 = vsyncadd [#allocation7], %s49
      %s51 = sshll.u32 [#allocation8], 4
      %s52 = int_to_ptr.vmem [resolvable:$true] %s51
      %57 = dma.hbm_to_vmem [thread:$0]  %s4, 10240, %s52, [#allocation7], 640, 640, 40
    $region21: #{tpu_custom_call.1} parent=1 // pred_fallthru
      _
    // Predicated region
    $region22: #{tpu_custom_call.1} parent=1 // pred_check
      _
    $region23: #{tpu_custom_call.1} parent=1 // pred_check_branch
      %59 = sbr.rel (0) target = $region25
    $region24: #{tpu_custom_call.1} parent=1 // pred_region
      _
    $region25: #{tpu_custom_call.1} parent=1 // pred_fallthru
      _
    // Predicated region
    $region26: #{tpu_custom_call.1} parent=1 // pred_check
      _
    $region27: #{tpu_custom_call.1} parent=1 // pred_check_branch
      %61 = sbr.rel (0) target = $region29
    $region28: #{tpu_custom_call.1} parent=1 // pred_region
      %62 = dma.done [#allocation4], 4096
    $region29: #{tpu_custom_call.1} parent=1 // pred_fallthru
      _
    // Predicated region
    $region30: #{tpu_custom_call.1} parent=1 // pred_check
      _
    $region31: #{tpu_custom_call.1} parent=1 // pred_check_branch
      %64 = sbr.rel (0) target = $region33
    $region32: #{tpu_custom_call.1} parent=1 // pred_region
      %65 = dma.done [#allocation7], 2048
    $region33: #{tpu_custom_call.1} parent=1 // pred_fallthru
      _
    // Predicated region
    $region34: #{tpu_custom_call.1} parent=1 // pred_check
      _
    $region35: #{tpu_custom_call.1} parent=1 // pred_check_branch
      %67 = sbr.rel (0) target = $region37
    $region36: #{tpu_custom_call.1} parent=1 // pred_region
      %68 = dma.done [#allocation7], 10240
    $region37: #{tpu_custom_call.1} parent=1 // pred_fallthru
      _
    %v69 = vld [vmem:[#allocation3] sm:$0xff]
    %v70 = vld [vmem:[#allocation3 + $0x8] sm:$0xff]
    %v71 = vld [vmem:[#allocation3 + $0x10] sm:$0xff]
    %v72 = vld [vmem:[#allocation3 + $0x18] sm:$0xff]
    %v73 = vld [vmem:[#allocation3 + $0x20] sm:$0xff]
    %v74 = vld [vmem:[#allocation3 + $0x28] sm:$0xff]
    %v75 = vld [vmem:[#allocation3 + $0x30] sm:$0xff]
    %v76 = vld [vmem:[#allocation3 + $0x38] sm:$0xff]
    %v77 = vld [vmem:[#allocation3 + $0x40] sm:$0xff]
    %v78 = vld [vmem:[#allocation3 + $0x48] sm:$0xff]
    %v79 = vld [vmem:[#allocation3 + $0x50] sm:$0xff]
    %v80 = vld [vmem:[#allocation3 + $0x58] sm:$0xff]
    %v81 = vld [vmem:[#allocation3 + $0x60] sm:$0xff]
    %v82 = vld [vmem:[#allocation3 + $0x68] sm:$0xff]
    %v83 = vld [vmem:[#allocation3 + $0x70] sm:$0xff]
    %v84 = vld [vmem:[#allocation3 + $0x78] sm:$0xff]
    %v85 = vld [vmem:[#allocation3 + $0x80] sm:$0xff]
    %v86 = vld [vmem:[#allocation3 + $0x88] sm:$0xff]
    %v87 = vld [vmem:[#allocation3 + $0x90] sm:$0xff]
    %v88 = vld [vmem:[#allocation3 + $0x98] sm:$0xff]
    %v89 = vld [vmem:[#allocation3 + $0xa0] sm:$0xff]
    %v90 = vld [vmem:[#allocation3 + $0xa8] sm:$0xff]
    %v91 = vld [vmem:[#allocation3 + $0xb0] sm:$0xff]
    %v92 = vld [vmem:[#allocation3 + $0xb8] sm:$0xff]
    %v93 = vld [vmem:[#allocation3 + $0xc0] sm:$0xff]
    %v94 = vld [vmem:[#allocation3 + $0xc8] sm:$0xff]
    %v95 = vld [vmem:[#allocation3 + $0xd0] sm:$0xff]
    %v96 = vld [vmem:[#allocation3 + $0xd8] sm:$0xff]
    %v97 = vld [vmem:[#allocation3 + $0xe0] sm:$0xff]
    %v98 = vld [vmem:[#allocation3 + $0xe8] sm:$0xff]
    %v99 = vld [vmem:[#allocation3 + $0xf0] sm:$0xff]
    %v100 = vld [vmem:[#allocation3 + $0xf8] sm:$0xff]
    %v101 = vld [vmem:[#allocation6] sm:$0xff]
    %v102 = vld [vmem:[#allocation6 + $0x8] sm:$0xff]
    %v103 = vld [vmem:[#allocation6 + $0x10] sm:$0xff]
    %v104 = vld [vmem:[#allocation6 + $0x18] sm:$0xff]
    %v105 = vld [vmem:[#allocation6 + $0x20] sm:$0xff]
    %v106 = vld [vmem:[#allocation6 + $0x28] sm:$0xff]
    %v107 = vld [vmem:[#allocation6 + $0x30] sm:$0xff]
    %v108 = vld [vmem:[#allocation6 + $0x38] sm:$0xff]
    %v109 = vld [vmem:[#allocation6 + $0x40] sm:$0xff]
    %v110 = vld [vmem:[#allocation6 + $0x48] sm:$0xff]
    %v111 = vld [vmem:[#allocation6 + $0x50] sm:$0xff]
    %v112 = vld [vmem:[#allocation6 + $0x58] sm:$0xff]
    %v113 = vld [vmem:[#allocation6 + $0x60] sm:$0xff]
    %v114 = vld [vmem:[#allocation6 + $0x68] sm:$0xff]
    %v115 = vld [vmem:[#allocation6 + $0x70] sm:$0xff]
    %v116 = vld [vmem:[#allocation6 + $0x78] sm:$0xff]
    %v117 = vld [vmem:[%s3] sm:$0x1]
    %v119 = vlaneseq
    %v120 = vshrl.u32 %v119, 7
    %v121 = vsub.s32 0, %v120
    %v122 = vrot.slane %v117, %v121
    %124 = vmatprep.subr.mxu0 0.0
    %125 = vmatpush1.msra.mxu0 %v101
    %126 = vmatprep.subr.mxu0 0.0
    %127 = vmatpush1.msra.mxu0 %v102
    %128 = vmatprep.subr.mxu0 0.0
    %129 = vmatpush1.msra.mxu0 %v103
    %130 = vmatprep.subr.mxu0 0.0
    %131 = vmatpush1.msra.mxu0 %v104
    %132 = vmatprep.subr.mxu0 0.0
    %133 = vmatpush1.msra.mxu0 %v105
    %134 = vmatprep.subr.mxu0 0.0
    %135 = vmatpush1.msra.mxu0 %v106
    %136 = vmatprep.subr.mxu0 0.0
    %137 = vmatpush1.msra.mxu0 %v107
    %138 = vmatprep.subr.mxu0 0.0
    %139 = vmatpush1.msra.mxu0 %v108
    %140 = vmatprep.subr.mxu0 0.0
    %141 = vmatpush1.msra.mxu0 %v109
    %142 = vmatprep.subr.mxu0 0.0
    %143 = vmatpush1.msra.mxu0 %v110
    %144 = vmatprep.subr.mxu0 0.0
    %145 = vmatpush1.msra.mxu0 %v111
    %146 = vmatprep.subr.mxu0 0.0
    %147 = vmatpush1.msra.mxu0 %v112
    %148 = vmatprep.subr.mxu0 0.0
    %149 = vmatpush1.msra.mxu0 %v113
    %150 = vmatprep.subr.mxu0 0.0
    %151 = vmatpush1.msra.mxu0 %v114
    %152 = vmatprep.subr.mxu0 0.0
    %153 = vmatpush1.msra.mxu0 %v115
    %154 = vmatprep.subr.mxu0 0.0
    %155 = vmatpush1.msra.mxu0 %v116
    %156 = vmatprep.subr.mxu0 0.0
    %157 = vmatpush1.msra.mxu0 0.0
    %158 = vmatprep.subr.mxu0 0.0
    %159 = vmatpush1.msra.mxu0 0.0
    %160 = vmatprep.subr.mxu0 0.0
    %161 = vmatpush1.msra.mxu0 0.0
    %162 = vmatprep.subr.mxu0 0.0
    %163 = vmatpush1.msra.mxu0 0.0
    %164 = vmatprep.subr.mxu0 0.0
    %165 = vmatpush1.msra.mxu0 0.0
    %166 = vmatprep.subr.mxu0 0.0
    %167 = vmatpush1.msra.mxu0 0.0
    %168 = vmatprep.subr.mxu0 0.0
    %169 = vmatpush1.msra.mxu0 0.0
    %170 = vmatprep.subr.mxu0 0.0
    %171 = vmatpush1.msra.mxu0 0.0
    %172 = vmatprep.subr.mxu0 0.0
    %173 = vmatpush1.msra.mxu0 0.0
    %174 = vmatprep.subr.mxu0 0.0
    %175 = vmatpush1.msra.mxu0 0.0
    %176 = vmatprep.subr.mxu0 0.0
    %177 = vmatpush1.msra.mxu0 0.0
    %178 = vmatprep.subr.mxu0 0.0
    %179 = vmatpush1.msra.mxu0 0.0
    %180 = vmatprep.subr.mxu0 0.0
    %181 = vmatpush1.msra.mxu0 0.0
    %182 = vmatprep.subr.mxu0 0.0
    %183 = vmatpush1.msra.mxu0 0.0
    %184 = vmatprep.subr.mxu0 0.0
    %185 = vmatpush1.msra.mxu0 0.0
    %186 = vmatprep.subr.mxu0 0.0
    %187 = vmatpush1.msra.mxu0 0.0
    %188 = vmatprep.mubr.f32.mxu0 0.0
    %189 = vmatmul.mubr.f32.gmra.mrb[0].mxu0 %v69
    %v190 = vpop.f32.mrb[0].mxu0
    %v191 = vadd.f32 %v122, %v190
    %v192 = vpop.f32.mrb[0].mxu0
    %193 = vmatprep.mubr.f32.mxu0 0.0
    %194 = vmatmul.mubr.f32.gmra.mrb[0].mxu0 %v70
    %v195 = vpop.f32.mrb[0].mxu0
    %v196 = vadd.f32 %v122, %v195
    %v197 = vpop.f32.mrb[0].mxu0
    %198 = vmatprep.mubr.f32.mxu0 0.0
    %199 = vmatmul.mubr.f32.gmra.mrb[0].mxu0 %v71
    %v200 = vpop.f32.mrb[0].mxu0
    %v201 = vadd.f32 %v122, %v200
    %v202 = vpop.f32.mrb[0].mxu0
    %203 = vmatprep.mubr.f32.mxu0 0.0
    %204 = vmatmul.mubr.f32.gmra.mrb[0].mxu0 %v72
    %v205 = vpop.f32.mrb[0].mxu0
    %v206 = vadd.f32 %v122, %v205
    %v207 = vpop.f32.mrb[0].mxu0
    %208 = vmatprep.mubr.f32.mxu0 0.0
    %209 = vmatmul.mubr.f32.gmra.mrb[0].mxu0 %v73
    %v210 = vpop.f32.mrb[0].mxu0
    %v211 = vadd.f32 %v122, %v210
    %v212 = vpop.f32.mrb[0].mxu0
    %213 = vmatprep.mubr.f32.mxu0 0.0
    %214 = vmatmul.mubr.f32.gmra.mrb[0].mxu0 %v74
    %v215 = vpop.f32.mrb[0].mxu0
    %v216 = vadd.f32 %v122, %v215
    %v217 = vpop.f32.mrb[0].mxu0
    %218 = vmatprep.mubr.f32.mxu0 0.0
    %219 = vmatmul.mubr.f32.gmra.mrb[0].mxu0 %v75
    %v220 = vpop.f32.mrb[0].mxu0
    %v221 = vadd.f32 %v122, %v220
    %v222 = vpop.f32.mrb[0].mxu0
    %223 = vmatprep.mubr.f32.mxu0 0.0
    %224 = vmatmul.mubr.f32.gmra.mrb[0].mxu0 %v76
    %v225 = vpop.f32.mrb[0].mxu0
    %v226 = vadd.f32 %v122, %v225
    %v227 = vpop.f32.mrb[0].mxu0
    %228 = vmatprep.mubr.f32.mxu0 0.0
    %229 = vmatmul.mubr.f32.gmra.mrb[0].mxu0 %v77
    %v230 = vpop.f32.mrb[0].mxu0
    %v231 = vadd.f32 %v122, %v230
    %v232 = vpop.f32.mrb[0].mxu0
    %233 = vmatprep.mubr.f32.mxu0 0.0
    %234 = vmatmul.mubr.f32.gmra.mrb[0].mxu0 %v78
    %v235 = vpop.f32.mrb[0].mxu0
    %v236 = vadd.f32 %v122, %v235
    %v237 = vpop.f32.mrb[0].mxu0
    %238 = vmatprep.mubr.f32.mxu0 0.0
    %239 = vmatmul.mubr.f32.gmra.mrb[0].mxu0 %v79
    %v240 = vpop.f32.mrb[0].mxu0
    %v241 = vadd.f32 %v122, %v240
    %v242 = vpop.f32.mrb[0].mxu0
    %243 = vmatprep.mubr.f32.mxu0 0.0
    %244 = vmatmul.mubr.f32.gmra.mrb[0].mxu0 %v80
    %v245 = vpop.f32.mrb[0].mxu0
    %v246 = vadd.f32 %v122, %v245
    %v247 = vpop.f32.mrb[0].mxu0
    %248 = vmatprep.mubr.f32.mxu0 0.0
    %249 = vmatmul.mubr.f32.gmra.mrb[0].mxu0 %v81
    %v250 = vpop.f32.mrb[0].mxu0
    %v251 = vadd.f32 %v122, %v250
    %v252 = vpop.f32.mrb[0].mxu0
    %253 = vmatprep.mubr.f32.mxu0 0.0
    %254 = vmatmul.mubr.f32.gmra.mrb[0].mxu0 %v82
    %v255 = vpop.f32.mrb[0].mxu0
    %v256 = vadd.f32 %v122, %v255
    %v257 = vpop.f32.mrb[0].mxu0
    %258 = vmatprep.mubr.f32.mxu0 0.0
    %259 = vmatmul.mubr.f32.gmra.mrb[0].mxu0 %v83
    %v260 = vpop.f32.mrb[0].mxu0
    %v261 = vadd.f32 %v122, %v260
    %v262 = vpop.f32.mrb[0].mxu0
    %263 = vmatprep.mubr.f32.mxu0 0.0
    %264 = vmatmul.mubr.f32.gmra.mrb[0].mxu0 %v84
    %v265 = vpop.f32.mrb[0].mxu0
    %v266 = vadd.f32 %v122, %v265
    %v267 = vpop.f32.mrb[0].mxu0
    %268 = vmatprep.mubr.f32.mxu0 0.0
    %269 = vmatmul.mubr.f32.gmra.mrb[0].mxu0 %v85
    %v270 = vpop.f32.mrb[0].mxu0
    %v271 = vadd.f32 %v122, %v270
    %v272 = vpop.f32.mrb[0].mxu0
    %273 = vmatprep.mubr.f32.mxu0 0.0
    %274 = vmatmul.mubr.f32.gmra.mrb[0].mxu0 %v86
    %v275 = vpop.f32.mrb[0].mxu0
    %v276 = vadd.f32 %v122, %v275
    %v277 = vpop.f32.mrb[0].mxu0
    %278 = vmatprep.mubr.f32.mxu0 0.0
    %279 = vmatmul.mubr.f32.gmra.mrb[0].mxu0 %v87
    %v280 = vpop.f32.mrb[0].mxu0
    %v281 = vadd.f32 %v122, %v280
    %v282 = vpop.f32.mrb[0].mxu0
    %283 = vmatprep.mubr.f32.mxu0 0.0
    %284 = vmatmul.mubr.f32.gmra.mrb[0].mxu0 %v88
    %v285 = vpop.f32.mrb[0].mxu0
    %v286 = vadd.f32 %v122, %v285
    %v287 = vpop.f32.mrb[0].mxu0
    %288 = vmatprep.mubr.f32.mxu0 0.0
    %289 = vmatmul.mubr.f32.gmra.mrb[0].mxu0 %v89
    %v290 = vpop.f32.mrb[0].mxu0
    %v291 = vadd.f32 %v122, %v290
    %v292 = vpop.f32.mrb[0].mxu0
    %293 = vmatprep.mubr.f32.mxu0 0.0
    %294 = vmatmul.mubr.f32.gmra.mrb[0].mxu0 %v90
    %v295 = vpop.f32.mrb[0].mxu0
    %v296 = vadd.f32 %v122, %v295
    %v297 = vpop.f32.mrb[0].mxu0
    %298 = vmatprep.mubr.f32.mxu0 0.0
    %299 = vmatmul.mubr.f32.gmra.mrb[0].mxu0 %v91
    %v300 = vpop.f32.mrb[0].mxu0
    %v301 = vadd.f32 %v122, %v300
    %v302 = vpop.f32.mrb[0].mxu0
    %303 = vmatprep.mubr.f32.mxu0 0.0
    %304 = vmatmul.mubr.f32.gmra.mrb[0].mxu0 %v92
    %v305 = vpop.f32.mrb[0].mxu0
    %v306 = vadd.f32 %v122, %v305
    %v307 = vpop.f32.mrb[0].mxu0
    %308 = vmatprep.mubr.f32.mxu0 0.0
    %309 = vmatmul.mubr.f32.gmra.mrb[0].mxu0 %v93
    %v310 = vpop.f32.mrb[0].mxu0
    %v311 = vadd.f32 %v122, %v310
    %v312 = vpop.f32.mrb[0].mxu0
    %313 = vmatprep.mubr.f32.mxu0 0.0
    %314 = vmatmul.mubr.f32.gmra.mrb[0].mxu0 %v94
    %v315 = vpop.f32.mrb[0].mxu0
    %v316 = vadd.f32 %v122, %v315
    %v317 = vpop.f32.mrb[0].mxu0
    %318 = vmatprep.mubr.f32.mxu0 0.0
    %319 = vmatmul.mubr.f32.gmra.mrb[0].mxu0 %v95
    %v320 = vpop.f32.mrb[0].mxu0
    %v321 = vadd.f32 %v122, %v320
    %v322 = vpop.f32.mrb[0].mxu0
    %323 = vmatprep.mubr.f32.mxu0 0.0
    %324 = vmatmul.mubr.f32.gmra.mrb[0].mxu0 %v96
    %v325 = vpop.f32.mrb[0].mxu0
    %v326 = vadd.f32 %v122, %v325
    %v327 = vpop.f32.mrb[0].mxu0
    %328 = vmatprep.mubr.f32.mxu0 0.0
    %329 = vmatmul.mubr.f32.gmra.mrb[0].mxu0 %v97
    %v330 = vpop.f32.mrb[0].mxu0
    %v331 = vadd.f32 %v122, %v330
    %v332 = vpop.f32.mrb[0].mxu0
    %333 = vmatprep.mubr.f32.mxu0 0.0
    %334 = vmatmul.mubr.f32.gmra.mrb[0].mxu0 %v98
    %v335 = vpop.f32.mrb[0].mxu0
    %v336 = vadd.f32 %v122, %v335
    %v337 = vpop.f32.mrb[0].mxu0
    %338 = vmatprep.mubr.f32.mxu0 0.0
    %339 = vmatmul.mubr.f32.gmra.mrb[0].mxu0 %v99
    %v340 = vpop.f32.mrb[0].mxu0
    %v341 = vadd.f32 %v122, %v340
    %v342 = vpop.f32.mrb[0].mxu0
    %343 = vmatprep.mubr.f32.mxu0 0.0
    %344 = vmatmul.mubr.f32.gmra.mrb[0].mxu0 %v100
    %v345 = vpop.f32.mrb[0].mxu0
    %v346 = vadd.f32 %v122, %v345
    %v347 = vpop.f32.mrb[0].mxu0
    %348 = vdwg.mxu0
    %v349 = vmax.f32 %v191, 0.0
    %v350 = vmax.f32 %v196, 0.0
    %v351 = vmax.f32 %v201, 0.0
    %v352 = vmax.f32 %v206, 0.0
    %v353 = vmax.f32 %v211, 0.0
    %v354 = vmax.f32 %v216, 0.0
    %v355 = vmax.f32 %v221, 0.0
    %v356 = vmax.f32 %v226, 0.0
    %v357 = vmax.f32 %v231, 0.0
    %v358 = vmax.f32 %v236, 0.0
    %v359 = vmax.f32 %v241, 0.0
    %v360 = vmax.f32 %v246, 0.0
    %v361 = vmax.f32 %v251, 0.0
    %v362 = vmax.f32 %v256, 0.0
    %v363 = vmax.f32 %v261, 0.0
    %v364 = vmax.f32 %v266, 0.0
    %v365 = vmax.f32 %v271, 0.0
    %v366 = vmax.f32 %v276, 0.0
    %v367 = vmax.f32 %v281, 0.0
    %v368 = vmax.f32 %v286, 0.0
    %v369 = vmax.f32 %v291, 0.0
    %v370 = vmax.f32 %v296, 0.0
    %v371 = vmax.f32 %v301, 0.0
    %v372 = vmax.f32 %v306, 0.0
    %v373 = vmax.f32 %v311, 0.0
    %v374 = vmax.f32 %v316, 0.0
    %v375 = vmax.f32 %v321, 0.0
    %v376 = vmax.f32 %v326, 0.0
    %v377 = vmax.f32 %v331, 0.0
    %v378 = vmax.f32 %v336, 0.0
    %v379 = vmax.f32 %v341, 0.0
    %v380 = vmax.f32 %v346, 0.0
    %v381 = vld [vmem:[#allocation8] sm:$0xff]
    %v382 = vld [vmem:[#allocation8 + $0x8] sm:$0xff]
    %v383 = vld [vmem:[#allocation8 + $0x10] sm:$0xff]
    %v384 = vld [vmem:[#allocation8 + $0x18] sm:$0xff]
    %v385 = vld [vmem:[#allocation8 + $0x20] sm:$0xff]
    %v386 = vld [vmem:[#allocation8 + $0x28] sm:$0xff]
    %v387 = vld [vmem:[#allocation8 + $0x30] sm:$0xff]
    %v388 = vld [vmem:[#allocation8 + $0x38] sm:$0xff]
    %v389 = vld [vmem:[#allocation8 + $0x40] sm:$0xff]
    %v390 = vld [vmem:[#allocation8 + $0x48] sm:$0xff]
    %v391 = vld [vmem:[#allocation8 + $0x50] sm:$0xff]
    %v392 = vld [vmem:[#allocation8 + $0x58] sm:$0xff]
    %v393 = vld [vmem:[#allocation8 + $0x60] sm:$0xff]
    %v394 = vld [vmem:[#allocation8 + $0x68] sm:$0xff]
    %v395 = vld [vmem:[#allocation8 + $0x70] sm:$0xff]
    %v396 = vld [vmem:[#allocation8 + $0x78] sm:$0xff]
    %v397 = vld [vmem:[#allocation8 + $0x80] sm:$0xff]
    %v398 = vld [vmem:[#allocation8 + $0x88] sm:$0xff]
    %v399 = vld [vmem:[#allocation8 + $0x90] sm:$0xff]
    %v400 = vld [vmem:[#allocation8 + $0x98] sm:$0xff]
    %v401 = vld [vmem:[#allocation8 + $0xa0] sm:$0xff]
    %v402 = vld [vmem:[#allocation8 + $0xa8] sm:$0xff]
    %v403 = vld [vmem:[#allocation8 + $0xb0] sm:$0xff]
    %v404 = vld [vmem:[#allocation8 + $0xb8] sm:$0xff]
    %v405 = vld [vmem:[#allocation8 + $0xc0] sm:$0xff]
    %v406 = vld [vmem:[#allocation8 + $0xc8] sm:$0xff]
    %v407 = vld [vmem:[#allocation8 + $0xd0] sm:$0xff]
    %v408 = vld [vmem:[#allocation8 + $0xd8] sm:$0xff]
    %v409 = vld [vmem:[#allocation8 + $0xe0] sm:$0xff]
    %v410 = vld [vmem:[#allocation8 + $0xe8] sm:$0xff]
    %v411 = vld [vmem:[#allocation8 + $0xf0] sm:$0xff]
    %v412 = vld [vmem:[#allocation8 + $0xf8] sm:$0xff]
    %v413 = vld [vmem:[#allocation8 + $0x100] sm:$0xff]
    %v414 = vld [vmem:[#allocation8 + $0x108] sm:$0xff]
    %v415 = vld [vmem:[#allocation8 + $0x110] sm:$0xff]
    %v416 = vld [vmem:[#allocation8 + $0x118] sm:$0xff]
    %v417 = vld [vmem:[#allocation8 + $0x120] sm:$0xff]
    %v418 = vld [vmem:[#allocation8 + $0x128] sm:$0xff]
    %v419 = vld [vmem:[#allocation8 + $0x130] sm:$0xff]
    %v420 = vld [vmem:[#allocation8 + $0x138] sm:$0xff]
    %v421 = vld [vmem:[#allocation8 + $0x140] sm:$0xff]
    %v422 = vld [vmem:[#allocation8 + $0x148] sm:$0xff]
    %v423 = vld [vmem:[#allocation8 + $0x150] sm:$0xff]
    %v424 = vld [vmem:[#allocation8 + $0x158] sm:$0xff]
    %v425 = vld [vmem:[#allocation8 + $0x160] sm:$0xff]
    %v426 = vld [vmem:[#allocation8 + $0x168] sm:$0xff]
    %v427 = vld [vmem:[#allocation8 + $0x170] sm:$0xff]
    %v428 = vld [vmem:[#allocation8 + $0x178] sm:$0xff]
    %v429 = vld [vmem:[#allocation8 + $0x180] sm:$0xff]
    %v430 = vld [vmem:[#allocation8 + $0x188] sm:$0xff]
    %v431 = vld [vmem:[#allocation8 + $0x190] sm:$0xff]
    %v432 = vld [vmem:[#allocation8 + $0x198] sm:$0xff]
    %v433 = vld [vmem:[#allocation8 + $0x1a0] sm:$0xff]
    %v434 = vld [vmem:[#allocation8 + $0x1a8] sm:$0xff]
    %v435 = vld [vmem:[#allocation8 + $0x1b0] sm:$0xff]
    %v436 = vld [vmem:[#allocation8 + $0x1b8] sm:$0xff]
    %v437 = vld [vmem:[#allocation8 + $0x1c0] sm:$0xff]
    %v438 = vld [vmem:[#allocation8 + $0x1c8] sm:$0xff]
    %v439 = vld [vmem:[#allocation8 + $0x1d0] sm:$0xff]
    %v440 = vld [vmem:[#allocation8 + $0x1d8] sm:$0xff]
    %v441 = vld [vmem:[#allocation8 + $0x1e0] sm:$0xff]
    %v442 = vld [vmem:[#allocation8 + $0x1e8] sm:$0xff]
    %v443 = vld [vmem:[#allocation8 + $0x1f0] sm:$0xff]
    %v444 = vld [vmem:[#allocation8 + $0x1f8] sm:$0xff]
    %v445 = vld [vmem:[#allocation8 + $0x200] sm:$0xff]
    %v446 = vld [vmem:[#allocation8 + $0x208] sm:$0xff]
    %v447 = vld [vmem:[#allocation8 + $0x210] sm:$0xff]
    %v448 = vld [vmem:[#allocation8 + $0x218] sm:$0xff]
    %v449 = vld [vmem:[#allocation8 + $0x220] sm:$0xff]
    %v450 = vld [vmem:[#allocation8 + $0x228] sm:$0xff]
    %v451 = vld [vmem:[#allocation8 + $0x230] sm:$0xff]
    %v452 = vld [vmem:[#allocation8 + $0x238] sm:$0xff]
    %v453 = vld [vmem:[#allocation8 + $0x240] sm:$0xff]
    %v454 = vld [vmem:[#allocation8 + $0x248] sm:$0xff]
    %v455 = vld [vmem:[#allocation8 + $0x250] sm:$0xff]
    %v456 = vld [vmem:[#allocation8 + $0x258] sm:$0xff]
    %v457 = vld [vmem:[#allocation8 + $0x260] sm:$0xff]
    %v458 = vld [vmem:[#allocation8 + $0x268] sm:$0xff]
    %v459 = vld [vmem:[#allocation8 + $0x270] sm:$0xff]
    %v460 = vld [vmem:[#allocation8 + $0x278] sm:$0xff]
    %v461 = vld [vmem:[%s5] sm:$0x1f]
    %v463 = vlaneseq
    %v464 = vshrl.u32 %v463, 7
    %v465 = vsub.s32 0, %v464
    %v466 = vrot.slane %v461, %v465
    %v467 = vlaneseq
    %v468 = vshrl.u32 %v467, 7
    %v469 = vsub.s32 1, %v468
    %v470 = vrot.slane %v461, %v469
    %v471 = vlaneseq
    %v472 = vshrl.u32 %v471, 7
    %v473 = vsub.s32 2, %v472
    %v474 = vrot.slane %v461, %v473
    %v475 = vlaneseq
    %v476 = vshrl.u32 %v475, 7
    %v477 = vsub.s32 3, %v476
    %v478 = vrot.slane %v461, %v477
    %v479 = vlaneseq
    %v480 = vshrl.u32 %v479, 7
    %v481 = vsub.s32 4, %v480
    %v482 = vrot.slane %v461, %v481
    %488 = vmatprep.subr.mxu0 %v382
    %489 = vmatpush1.msra.mxu0 %v381
    %490 = vmatprep.subr.mxu0 %v387
    %491 = vmatpush1.msra.mxu0 %v386
    %492 = vmatprep.subr.mxu0 %v392
    %493 = vmatpush1.msra.mxu0 %v391
    %494 = vmatprep.subr.mxu0 %v397
    %495 = vmatpush1.msra.mxu0 %v396
    %496 = vmatprep.subr.mxu0 %v402
    %497 = vmatpush1.msra.mxu0 %v401
    %498 = vmatprep.subr.mxu0 %v407
    %499 = vmatpush1.msra.mxu0 %v406
    %500 = vmatprep.subr.mxu0 %v412
    %501 = vmatpush1.msra.mxu0 %v411
    %502 = vmatprep.subr.mxu0 %v417
    %503 = vmatpush1.msra.mxu0 %v416
    %504 = vmatprep.subr.mxu0 %v422
    %505 = vmatpush1.msra.mxu0 %v421
    %506 = vmatprep.subr.mxu0 %v427
    %507 = vmatpush1.msra.mxu0 %v426
    %508 = vmatprep.subr.mxu0 %v432
    %509 = vmatpush1.msra.mxu0 %v431
    %510 = vmatprep.subr.mxu0 %v437
    %511 = vmatpush1.msra.mxu0 %v436
    %512 = vmatprep.subr.mxu0 %v442
    %513 = vmatpush1.msra.mxu0 %v441
    %514 = vmatprep.subr.mxu0 %v447
    %515 = vmatpush1.msra.mxu0 %v446
    %516 = vmatprep.subr.mxu0 %v452
    %517 = vmatpush1.msra.mxu0 %v451
    %518 = vmatprep.subr.mxu0 %v457
    %519 = vmatpush1.msra.mxu0 %v456
    %520 = vmatprep.subr.mxu0 0.0
    %521 = vmatpush1.msra.mxu0 0.0
    %522 = vmatprep.subr.mxu0 0.0
    %523 = vmatpush1.msra.mxu0 0.0
    %524 = vmatprep.subr.mxu0 0.0
    %525 = vmatpush1.msra.mxu0 0.0
    %526 = vmatprep.subr.mxu0 0.0
    %527 = vmatpush1.msra.mxu0 0.0
    %528 = vmatprep.subr.mxu0 0.0
    %529 = vmatpush1.msra.mxu0 0.0
    %530 = vmatprep.subr.mxu0 0.0
    %531 = vmatpush1.msra.mxu0 0.0
    %532 = vmatprep.subr.mxu0 0.0
    %533 = vmatpush1.msra.mxu0 0.0
    %534 = vmatprep.subr.mxu0 0.0
    %535 = vmatpush1.msra.mxu0 0.0
    %536 = vmatprep.subr.mxu0 0.0
    %537 = vmatpush1.msra.mxu0 0.0
    %538 = vmatprep.subr.mxu0 0.0
    %539 = vmatpush1.msra.mxu0 0.0
    %540 = vmatprep.subr.mxu0 0.0
    %541 = vmatpush1.msra.mxu0 0.0
    %542 = vmatprep.subr.mxu0 0.0
    %543 = vmatpush1.msra.mxu0 0.0
    %544 = vmatprep.subr.mxu0 0.0
    %545 = vmatpush1.msra.mxu0 0.0
    %546 = vmatprep.subr.mxu0 0.0
    %547 = vmatpush1.msra.mxu0 0.0
    %548 = vmatprep.subr.mxu0 0.0
    %549 = vmatpush1.msra.mxu0 0.0
    %550 = vmatprep.subr.mxu0 0.0
    %551 = vmatpush1.msra.mxu0 0.0
    %552 = vmatprep.mubr.f32.mxu0 0.0
    %553 = vmatmul.mubr.f32.gmra.mrb[0].mxu0 %v349
    %v554 = vpop.f32.mrb[0].mxu0
    %v555 = vadd.f32 %v466, %v554
    %v556 = vpop.f32.mrb[0].mxu0
    %v557 = vadd.f32 %v470, %v556
    %558 = vmatprep.mubr.f32.mxu0 0.0
    %559 = vmatmul.mubr.f32.gmra.mrb[0].mxu0 %v350
    %v560 = vpop.f32.mrb[0].mxu0
    %v561 = vadd.f32 %v466, %v560
    %v562 = vpop.f32.mrb[0].mxu0
    %v563 = vadd.f32 %v470, %v562
    %564 = vmatprep.mubr.f32.mxu0 0.0
    %565 = vmatmul.mubr.f32.gmra.mrb[0].mxu0 %v351
    %v566 = vpop.f32.mrb[0].mxu0
    %v567 = vadd.f32 %v466, %v566
    %v568 = vpop.f32.mrb[0].mxu0
    %v569 = vadd.f32 %v470, %v568
    %570 = vmatprep.mubr.f32.mxu0 0.0
    %571 = vmatmul.mubr.f32.gmra.mrb[0].mxu0 %v352
    %v572 = vpop.f32.mrb[0].mxu0
    %v573 = vadd.f32 %v466, %v572
    %v574 = vpop.f32.mrb[0].mxu0
    %v575 = vadd.f32 %v470, %v574
    %576 = vmatprep.mubr.f32.mxu0 0.0
    %577 = vmatmul.mubr.f32.gmra.mrb[0].mxu0 %v353
    %v578 = vpop.f32.mrb[0].mxu0
    %v579 = vadd.f32 %v466, %v578
    %v580 = vpop.f32.mrb[0].mxu0
    %v581 = vadd.f32 %v470, %v580
    %582 = vmatprep.mubr.f32.mxu0 0.0
    %583 = vmatmul.mubr.f32.gmra.mrb[0].mxu0 %v354
    %v584 = vpop.f32.mrb[0].mxu0
    %v585 = vadd.f32 %v466, %v584
    %v586 = vpop.f32.mrb[0].mxu0
    %v587 = vadd.f32 %v470, %v586
    %588 = vmatprep.mubr.f32.mxu0 0.0
    %589 = vmatmul.mubr.f32.gmra.mrb[0].mxu0 %v355
    %v590 = vpop.f32.mrb[0].mxu0
    %v591 = vadd.f32 %v466, %v590
    %v592 = vpop.f32.mrb[0].mxu0
    %v593 = vadd.f32 %v470, %v592
    %594 = vmatprep.mubr.f32.mxu0 0.0
    %595 = vmatmul.mubr.f32.gmra.mrb[0].mxu0 %v356
    %v596 = vpop.f32.mrb[0].mxu0
    %v597 = vadd.f32 %v466, %v596
    %v598 = vpop.f32.mrb[0].mxu0
    %v599 = vadd.f32 %v470, %v598
    %600 = vmatprep.mubr.f32.mxu0 0.0
    %601 = vmatmul.mubr.f32.gmra.mrb[0].mxu0 %v357
    %v602 = vpop.f32.mrb[0].mxu0
    %v603 = vadd.f32 %v466, %v602
    %v604 = vpop.f32.mrb[0].mxu0
    %v605 = vadd.f32 %v470, %v604
    %606 = vmatprep.mubr.f32.mxu0 0.0
    %607 = vmatmul.mubr.f32.gmra.mrb[0].mxu0 %v358
    %v608 = vpop.f32.mrb[0].mxu0
    %v609 = vadd.f32 %v466, %v608
    %v610 = vpop.f32.mrb[0].mxu0
    %v611 = vadd.f32 %v470, %v610
    %612 = vmatprep.mubr.f32.mxu0 0.0
    %613 = vmatmul.mubr.f32.gmra.mrb[0].mxu0 %v359
    %v614 = vpop.f32.mrb[0].mxu0
    %v615 = vadd.f32 %v466, %v614
    %v616 = vpop.f32.mrb[0].mxu0
    %v617 = vadd.f32 %v470, %v616
    %618 = vmatprep.mubr.f32.mxu0 0.0
    %619 = vmatmul.mubr.f32.gmra.mrb[0].mxu0 %v360
    %v620 = vpop.f32.mrb[0].mxu0
    %v621 = vadd.f32 %v466, %v620
    %v622 = vpop.f32.mrb[0].mxu0
    %v623 = vadd.f32 %v470, %v622
    %624 = vmatprep.mubr.f32.mxu0 0.0
    %625 = vmatmul.mubr.f32.gmra.mrb[0].mxu0 %v361
    %v626 = vpop.f32.mrb[0].mxu0
    %v627 = vadd.f32 %v466, %v626
    %v628 = vpop.f32.mrb[0].mxu0
    %v629 = vadd.f32 %v470, %v628
    %630 = vmatprep.mubr.f32.mxu0 0.0
    %631 = vmatmul.mubr.f32.gmra.mrb[0].mxu0 %v362
    %v632 = vpop.f32.mrb[0].mxu0
    %v633 = vadd.f32 %v466, %v632
    %v634 = vpop.f32.mrb[0].mxu0
    %v635 = vadd.f32 %v470, %v634
    %636 = vmatprep.mubr.f32.mxu0 0.0
    %637 = vmatmul.mubr.f32.gmra.mrb[0].mxu0 %v363
    %v638 = vpop.f32.mrb[0].mxu0
    %v639 = vadd.f32 %v466, %v638
    %v640 = vpop.f32.mrb[0].mxu0
    %v641 = vadd.f32 %v470, %v640
    %642 = vmatprep.mubr.f32.mxu0 0.0
    %643 = vmatmul.mubr.f32.gmra.mrb[0].mxu0 %v364
    %v644 = vpop.f32.mrb[0].mxu0
    %v645 = vadd.f32 %v466, %v644
    %v646 = vpop.f32.mrb[0].mxu0
    %v647 = vadd.f32 %v470, %v646
    %648 = vmatprep.mubr.f32.mxu0 0.0
    %649 = vmatmul.mubr.f32.gmra.mrb[0].mxu0 %v365
    %v650 = vpop.f32.mrb[0].mxu0
    %v651 = vadd.f32 %v466, %v650
    %v652 = vpop.f32.mrb[0].mxu0
    %v653 = vadd.f32 %v470, %v652
    %654 = vmatprep.mubr.f32.mxu0 0.0
    %655 = vmatmul.mubr.f32.gmra.mrb[0].mxu0 %v366
    %v656 = vpop.f32.mrb[0].mxu0
    %v657 = vadd.f32 %v466, %v656
    %v658 = vpop.f32.mrb[0].mxu0
    %v659 = vadd.f32 %v470, %v658
    %660 = vmatprep.mubr.f32.mxu0 0.0
    %661 = vmatmul.mubr.f32.gmra.mrb[0].mxu0 %v367
    %v662 = vpop.f32.mrb[0].mxu0
    %v663 = vadd.f32 %v466, %v662
    %v664 = vpop.f32.mrb[0].mxu0
    %v665 = vadd.f32 %v470, %v664
    %666 = vmatprep.mubr.f32.mxu0 0.0
    %667 = vmatmul.mubr.f32.gmra.mrb[0].mxu0 %v368
    %v668 = vpop.f32.mrb[0].mxu0
    %v669 = vadd.f32 %v466, %v668
    %v670 = vpop.f32.mrb[0].mxu0
    %v671 = vadd.f32 %v470, %v670
    %672 = vmatprep.mubr.f32.mxu0 0.0
    %673 = vmatmul.mubr.f32.gmra.mrb[0].mxu0 %v369
    %v674 = vpop.f32.mrb[0].mxu0
    %v675 = vadd.f32 %v466, %v674
    %v676 = vpop.f32.mrb[0].mxu0
    %v677 = vadd.f32 %v470, %v676
    %678 = vmatprep.mubr.f32.mxu0 0.0
    %679 = vmatmul.mubr.f32.gmra.mrb[0].mxu0 %v370
    %v680 = vpop.f32.mrb[0].mxu0
    %v681 = vadd.f32 %v466, %v680
    %v682 = vpop.f32.mrb[0].mxu0
    %v683 = vadd.f32 %v470, %v682
    %684 = vmatprep.mubr.f32.mxu0 0.0
    %685 = vmatmul.mubr.f32.gmra.mrb[0].mxu0 %v371
    %v686 = vpop.f32.mrb[0].mxu0
    %v687 = vadd.f32 %v466, %v686
    %v688 = vpop.f32.mrb[0].mxu0
    %v689 = vadd.f32 %v470, %v688
    %690 = vmatprep.mubr.f32.mxu0 0.0
    %691 = vmatmul.mubr.f32.gmra.mrb[0].mxu0 %v372
    %v692 = vpop.f32.mrb[0].mxu0
    %v693 = vadd.f32 %v466, %v692
    %v694 = vpop.f32.mrb[0].mxu0
    %v695 = vadd.f32 %v470, %v694
    %696 = vmatprep.mubr.f32.mxu0 0.0
    %697 = vmatmul.mubr.f32.gmra.mrb[0].mxu0 %v373
    %v698 = vpop.f32.mrb[0].mxu0
    %v699 = vadd.f32 %v466, %v698
    %v700 = vpop.f32.mrb[0].mxu0
    %v701 = vadd.f32 %v470, %v700
    %702 = vmatprep.mubr.f32.mxu0 0.0
    %703 = vmatmul.mubr.f32.gmra.mrb[0].mxu0 %v374
    %v704 = vpop.f32.mrb[0].mxu0
    %v705 = vadd.f32 %v466, %v704
    %v706 = vpop.f32.mrb[0].mxu0
    %v707 = vadd.f32 %v470, %v706
    %708 = vmatprep.mubr.f32.mxu0 0.0
    %709 = vmatmul.mubr.f32.gmra.mrb[0].mxu0 %v375
    %v710 = vpop.f32.mrb[0].mxu0
    %v711 = vadd.f32 %v466, %v710
    %v712 = vpop.f32.mrb[0].mxu0
    %v713 = vadd.f32 %v470, %v712
    %714 = vmatprep.mubr.f32.mxu0 0.0
    %715 = vmatmul.mubr.f32.gmra.mrb[0].mxu0 %v376
    %v716 = vpop.f32.mrb[0].mxu0
    %v717 = vadd.f32 %v466, %v716
    %v718 = vpop.f32.mrb[0].mxu0
    %v719 = vadd.f32 %v470, %v718
    %720 = vmatprep.mubr.f32.mxu0 0.0
    %721 = vmatmul.mubr.f32.gmra.mrb[0].mxu0 %v377
    %v722 = vpop.f32.mrb[0].mxu0
    %v723 = vadd.f32 %v466, %v722
    %v724 = vpop.f32.mrb[0].mxu0
    %v725 = vadd.f32 %v470, %v724
    %726 = vmatprep.mubr.f32.mxu0 0.0
    %727 = vmatmul.mubr.f32.gmra.mrb[0].mxu0 %v378
    %v728 = vpop.f32.mrb[0].mxu0
    %v729 = vadd.f32 %v466, %v728
    %v730 = vpop.f32.mrb[0].mxu0
    %v731 = vadd.f32 %v470, %v730
    %732 = vmatprep.mubr.f32.mxu0 0.0
    %733 = vmatmul.mubr.f32.gmra.mrb[0].mxu0 %v379
    %v734 = vpop.f32.mrb[0].mxu0
    %v735 = vadd.f32 %v466, %v734
    %v736 = vpop.f32.mrb[0].mxu0
    %v737 = vadd.f32 %v470, %v736
    %738 = vmatprep.mubr.f32.mxu0 0.0
    %739 = vmatmul.mubr.f32.gmra.mrb[0].mxu0 %v380
    %v740 = vpop.f32.mrb[0].mxu0
    %v741 = vadd.f32 %v466, %v740
    %v742 = vpop.f32.mrb[0].mxu0
    %v743 = vadd.f32 %v470, %v742
    %744 = vdwg.mxu0
    %745 = vmatprep.subr.mxu0 %v384
    %746 = vmatpush1.msra.mxu0 %v383
    %747 = vmatprep.subr.mxu0 %v389
    %748 = vmatpush1.msra.mxu0 %v388
    %749 = vmatprep.subr.mxu0 %v394
    %750 = vmatpush1.msra.mxu0 %v393
    %751 = vmatprep.subr.mxu0 %v399
    %752 = vmatpush1.msra.mxu0 %v398
    %753 = vmatprep.subr.mxu0 %v404
    %754 = vmatpush1.msra.mxu0 %v403
    %755 = vmatprep.subr.mxu0 %v409
    %756 = vmatpush1.msra.mxu0 %v408
    %757 = vmatprep.subr.mxu0 %v414
    %758 = vmatpush1.msra.mxu0 %v413
    %759 = vmatprep.subr.mxu0 %v419
    %760 = vmatpush1.msra.mxu0 %v418
    %761 = vmatprep.subr.mxu0 %v424
    %762 = vmatpush1.msra.mxu0 %v423
    %763 = vmatprep.subr.mxu0 %v429
    %764 = vmatpush1.msra.mxu0 %v428
    %765 = vmatprep.subr.mxu0 %v434
    %766 = vmatpush1.msra.mxu0 %v433
    %767 = vmatprep.subr.mxu0 %v439
    %768 = vmatpush1.msra.mxu0 %v438
    %769 = vmatprep.subr.mxu0 %v444
    %770 = vmatpush1.msra.mxu0 %v443
    %771 = vmatprep.subr.mxu0 %v449
    %772 = vmatpush1.msra.mxu0 %v448
    %773 = vmatprep.subr.mxu0 %v454
    %774 = vmatpush1.msra.mxu0 %v453
    %775 = vmatprep.subr.mxu0 %v459
    %776 = vmatpush1.msra.mxu0 %v458
    %777 = vmatprep.subr.mxu0 0.0
    %778 = vmatpush1.msra.mxu0 0.0
    %779 = vmatprep.subr.mxu0 0.0
    %780 = vmatpush1.msra.mxu0 0.0
    %781 = vmatprep.subr.mxu0 0.0
    %782 = vmatpush1.msra.mxu0 0.0
    %783 = vmatprep.subr.mxu0 0.0
    %784 = vmatpush1.msra.mxu0 0.0
    %785 = vmatprep.subr.mxu0 0.0
    %786 = vmatpush1.msra.mxu0 0.0
    %787 = vmatprep.subr.mxu0 0.0
    %788 = vmatpush1.msra.mxu0 0.0
    %789 = vmatprep.subr.mxu0 0.0
    %790 = vmatpush1.msra.mxu0 0.0
    %791 = vmatprep.subr.mxu0 0.0
    %792 = vmatpush1.msra.mxu0 0.0
    %793 = vmatprep.subr.mxu0 0.0
    %794 = vmatpush1.msra.mxu0 0.0
    %795 = vmatprep.subr.mxu0 0.0
    %796 = vmatpush1.msra.mxu0 0.0
    %797 = vmatprep.subr.mxu0 0.0
    %798 = vmatpush1.msra.mxu0 0.0
    %799 = vmatprep.subr.mxu0 0.0
    %800 = vmatpush1.msra.mxu0 0.0
    %801 = vmatprep.subr.mxu0 0.0
    %802 = vmatpush1.msra.mxu0 0.0
    %803 = vmatprep.subr.mxu0 0.0
    %804 = vmatpush1.msra.mxu0 0.0
    %805 = vmatprep.subr.mxu0 0.0
    %806 = vmatpush1.msra.mxu0 0.0
    %807 = vmatprep.subr.mxu0 0.0
    %808 = vmatpush1.msra.mxu0 0.0
    %809 = vmatprep.mubr.f32.mxu0 0.0
    %810 = vmatmul.mubr.f32.gmra.mrb[0].mxu0 %v349
    %v811 = vpop.f32.mrb[0].mxu0
    %v812 = vadd.f32 %v474, %v811
    %v813 = vpop.f32.mrb[0].mxu0
    %v814 = vadd.f32 %v478, %v813
    %815 = vmatprep.mubr.f32.mxu0 0.0
    %816 = vmatmul.mubr.f32.gmra.mrb[0].mxu0 %v350
    %v817 = vpop.f32.mrb[0].mxu0
    %v818 = vadd.f32 %v474, %v817
    %v819 = vpop.f32.mrb[0].mxu0
    %v820 = vadd.f32 %v478, %v819
    %821 = vmatprep.mubr.f32.mxu0 0.0
    %822 = vmatmul.mubr.f32.gmra.mrb[0].mxu0 %v351
    %v823 = vpop.f32.mrb[0].mxu0
    %v824 = vadd.f32 %v474, %v823
    %v825 = vpop.f32.mrb[0].mxu0
    %v826 = vadd.f32 %v478, %v825
    %827 = vmatprep.mubr.f32.mxu0 0.0
    %828 = vmatmul.mubr.f32.gmra.mrb[0].mxu0 %v352
    %v829 = vpop.f32.mrb[0].mxu0
    %v830 = vadd.f32 %v474, %v829
    %v831 = vpop.f32.mrb[0].mxu0
    %v832 = vadd.f32 %v478, %v831
    %833 = vmatprep.mubr.f32.mxu0 0.0
    %834 = vmatmul.mubr.f32.gmra.mrb[0].mxu0 %v353
    %v835 = vpop.f32.mrb[0].mxu0
    %v836 = vadd.f32 %v474, %v835
    %v837 = vpop.f32.mrb[0].mxu0
    %v838 = vadd.f32 %v478, %v837
    %839 = vmatprep.mubr.f32.mxu0 0.0
    %840 = vmatmul.mubr.f32.gmra.mrb[0].mxu0 %v354
    %v841 = vpop.f32.mrb[0].mxu0
    %v842 = vadd.f32 %v474, %v841
    %v843 = vpop.f32.mrb[0].mxu0
    %v844 = vadd.f32 %v478, %v843
    %845 = vmatprep.mubr.f32.mxu0 0.0
    %846 = vmatmul.mubr.f32.gmra.mrb[0].mxu0 %v355
    %v847 = vpop.f32.mrb[0].mxu0
    %v848 = vadd.f32 %v474, %v847
    %v849 = vpop.f32.mrb[0].mxu0
    %v850 = vadd.f32 %v478, %v849
    %851 = vmatprep.mubr.f32.mxu0 0.0
    %852 = vmatmul.mubr.f32.gmra.mrb[0].mxu0 %v356
    %v853 = vpop.f32.mrb[0].mxu0
    %v854 = vadd.f32 %v474, %v853
    %v855 = vpop.f32.mrb[0].mxu0
    %v856 = vadd.f32 %v478, %v855
    %857 = vmatprep.mubr.f32.mxu0 0.0
    %858 = vmatmul.mubr.f32.gmra.mrb[0].mxu0 %v357
    %v859 = vpop.f32.mrb[0].mxu0
    %v860 = vadd.f32 %v474, %v859
    %v861 = vpop.f32.mrb[0].mxu0
    %v862 = vadd.f32 %v478, %v861
    %863 = vmatprep.mubr.f32.mxu0 0.0
    %864 = vmatmul.mubr.f32.gmra.mrb[0].mxu0 %v358
    %v865 = vpop.f32.mrb[0].mxu0
    %v866 = vadd.f32 %v474, %v865
    %v867 = vpop.f32.mrb[0].mxu0
    %v868 = vadd.f32 %v478, %v867
    %869 = vmatprep.mubr.f32.mxu0 0.0
    %870 = vmatmul.mubr.f32.gmra.mrb[0].mxu0 %v359
    %v871 = vpop.f32.mrb[0].mxu0
    %v872 = vadd.f32 %v474, %v871
    %v873 = vpop.f32.mrb[0].mxu0
    %v874 = vadd.f32 %v478, %v873
    %875 = vmatprep.mubr.f32.mxu0 0.0
    %876 = vmatmul.mubr.f32.gmra.mrb[0].mxu0 %v360
    %v877 = vpop.f32.mrb[0].mxu0
    %v878 = vadd.f32 %v474, %v877
    %v879 = vpop.f32.mrb[0].mxu0
    %v880 = vadd.f32 %v478, %v879
    %881 = vmatprep.mubr.f32.mxu0 0.0
    %882 = vmatmul.mubr.f32.gmra.mrb[0].mxu0 %v361
    %v883 = vpop.f32.mrb[0].mxu0
    %v884 = vadd.f32 %v474, %v883
    %v885 = vpop.f32.mrb[0].mxu0
    %v886 = vadd.f32 %v478, %v885
    %887 = vmatprep.mubr.f32.mxu0 0.0
    %888 = vmatmul.mubr.f32.gmra.mrb[0].mxu0 %v362
    %v889 = vpop.f32.mrb[0].mxu0
    %v890 = vadd.f32 %v474, %v889
    %v891 = vpop.f32.mrb[0].mxu0
    %v892 = vadd.f32 %v478, %v891
    %893 = vmatprep.mubr.f32.mxu0 0.0
    %894 = vmatmul.mubr.f32.gmra.mrb[0].mxu0 %v363
    %v895 = vpop.f32.mrb[0].mxu0
    %v896 = vadd.f32 %v474, %v895
    %v897 = vpop.f32.mrb[0].mxu0
    %v898 = vadd.f32 %v478, %v897
    %899 = vmatprep.mubr.f32.mxu0 0.0
    %900 = vmatmul.mubr.f32.gmra.mrb[0].mxu0 %v364
    %v901 = vpop.f32.mrb[0].mxu0
    %v902 = vadd.f32 %v474, %v901
    %v903 = vpop.f32.mrb[0].mxu0
    %v904 = vadd.f32 %v478, %v903
    %905 = vmatprep.mubr.f32.mxu0 0.0
    %906 = vmatmul.mubr.f32.gmra.mrb[0].mxu0 %v365
    %v907 = vpop.f32.mrb[0].mxu0
    %v908 = vadd.f32 %v474, %v907
    %v909 = vpop.f32.mrb[0].mxu0
    %v910 = vadd.f32 %v478, %v909
    %911 = vmatprep.mubr.f32.mxu0 0.0
    %912 = vmatmul.mubr.f32.gmra.mrb[0].mxu0 %v366
    %v913 = vpop.f32.mrb[0].mxu0
    %v914 = vadd.f32 %v474, %v913
    %v915 = vpop.f32.mrb[0].mxu0
    %v916 = vadd.f32 %v478, %v915
    %917 = vmatprep.mubr.f32.mxu0 0.0
    %918 = vmatmul.mubr.f32.gmra.mrb[0].mxu0 %v367
    %v919 = vpop.f32.mrb[0].mxu0
    %v920 = vadd.f32 %v474, %v919
    %v921 = vpop.f32.mrb[0].mxu0
    %v922 = vadd.f32 %v478, %v921
    %923 = vmatprep.mubr.f32.mxu0 0.0
    %924 = vmatmul.mubr.f32.gmra.mrb[0].mxu0 %v368
    %v925 = vpop.f32.mrb[0].mxu0
    %v926 = vadd.f32 %v474, %v925
    %v927 = vpop.f32.mrb[0].mxu0
    %v928 = vadd.f32 %v478, %v927
    %929 = vmatprep.mubr.f32.mxu0 0.0
    %930 = vmatmul.mubr.f32.gmra.mrb[0].mxu0 %v369
    %v931 = vpop.f32.mrb[0].mxu0
    %v932 = vadd.f32 %v474, %v931
    %v933 = vpop.f32.mrb[0].mxu0
    %v934 = vadd.f32 %v478, %v933
    %935 = vmatprep.mubr.f32.mxu0 0.0
    %936 = vmatmul.mubr.f32.gmra.mrb[0].mxu0 %v370
    %v937 = vpop.f32.mrb[0].mxu0
    %v938 = vadd.f32 %v474, %v937
    %v939 = vpop.f32.mrb[0].mxu0
    %v940 = vadd.f32 %v478, %v939
    %941 = vmatprep.mubr.f32.mxu0 0.0
    %942 = vmatmul.mubr.f32.gmra.mrb[0].mxu0 %v371
    %v943 = vpop.f32.mrb[0].mxu0
    %v944 = vadd.f32 %v474, %v943
    %v945 = vpop.f32.mrb[0].mxu0
    %v946 = vadd.f32 %v478, %v945
    %947 = vmatprep.mubr.f32.mxu0 0.0
    %948 = vmatmul.mubr.f32.gmra.mrb[0].mxu0 %v372
    %v949 = vpop.f32.mrb[0].mxu0
    %v950 = vadd.f32 %v474, %v949
    %v951 = vpop.f32.mrb[0].mxu0
    %v952 = vadd.f32 %v478, %v951
    %953 = vmatprep.mubr.f32.mxu0 0.0
    %954 = vmatmul.mubr.f32.gmra.mrb[0].mxu0 %v373
    %v955 = vpop.f32.mrb[0].mxu0
    %v956 = vadd.f32 %v474, %v955
    %v957 = vpop.f32.mrb[0].mxu0
    %v958 = vadd.f32 %v478, %v957
    %959 = vmatprep.mubr.f32.mxu0 0.0
    %960 = vmatmul.mubr.f32.gmra.mrb[0].mxu0 %v374
    %v961 = vpop.f32.mrb[0].mxu0
    %v962 = vadd.f32 %v474, %v961
    %v963 = vpop.f32.mrb[0].mxu0
    %v964 = vadd.f32 %v478, %v963
    %965 = vmatprep.mubr.f32.mxu0 0.0
    %966 = vmatmul.mubr.f32.gmra.mrb[0].mxu0 %v375
    %v967 = vpop.f32.mrb[0].mxu0
    %v968 = vadd.f32 %v474, %v967
    %v969 = vpop.f32.mrb[0].mxu0
    %v970 = vadd.f32 %v478, %v969
    %971 = vmatprep.mubr.f32.mxu0 0.0
    %972 = vmatmul.mubr.f32.gmra.mrb[0].mxu0 %v376
    %v973 = vpop.f32.mrb[0].mxu0
    %v974 = vadd.f32 %v474, %v973
    %v975 = vpop.f32.mrb[0].mxu0
    %v976 = vadd.f32 %v478, %v975
    %977 = vmatprep.mubr.f32.mxu0 0.0
    %978 = vmatmul.mubr.f32.gmra.mrb[0].mxu0 %v377
    %v979 = vpop.f32.mrb[0].mxu0
    %v980 = vadd.f32 %v474, %v979
    %v981 = vpop.f32.mrb[0].mxu0
    %v982 = vadd.f32 %v478, %v981
    %983 = vmatprep.mubr.f32.mxu0 0.0
    %984 = vmatmul.mubr.f32.gmra.mrb[0].mxu0 %v378
    %v985 = vpop.f32.mrb[0].mxu0
    %v986 = vadd.f32 %v474, %v985
    %v987 = vpop.f32.mrb[0].mxu0
    %v988 = vadd.f32 %v478, %v987
    %989 = vmatprep.mubr.f32.mxu0 0.0
    %990 = vmatmul.mubr.f32.gmra.mrb[0].mxu0 %v379
    %v991 = vpop.f32.mrb[0].mxu0
    %v992 = vadd.f32 %v474, %v991
    %v993 = vpop.f32.mrb[0].mxu0
    %v994 = vadd.f32 %v478, %v993
    %995 = vmatprep.mubr.f32.mxu0 0.0
    %996 = vmatmul.mubr.f32.gmra.mrb[0].mxu0 %v380
    %v997 = vpop.f32.mrb[0].mxu0
    %v998 = vadd.f32 %v474, %v997
    %v999 = vpop.f32.mrb[0].mxu0
    %v1000 = vadd.f32 %v478, %v999
    %1001 = vdwg.mxu0
    %1002 = vmatprep.subr.mxu0 0.0
    %1003 = vmatpush1.msra.mxu0 %v385
    %1004 = vmatprep.subr.mxu0 0.0
    %1005 = vmatpush1.msra.mxu0 %v390
    %1006 = vmatprep.subr.mxu0 0.0
    %1007 = vmatpush1.msra.mxu0 %v395
    %1008 = vmatprep.subr.mxu0 0.0
    %1009 = vmatpush1.msra.mxu0 %v400
    %1010 = vmatprep.subr.mxu0 0.0
    %1011 = vmatpush1.msra.mxu0 %v405
    %1012 = vmatprep.subr.mxu0 0.0
    %1013 = vmatpush1.msra.mxu0 %v410
    %1014 = vmatprep.subr.mxu0 0.0
    %1015 = vmatpush1.msra.mxu0 %v415
    %1016 = vmatprep.subr.mxu0 0.0
    %1017 = vmatpush1.msra.mxu0 %v420
    %1018 = vmatprep.subr.mxu0 0.0
    %1019 = vmatpush1.msra.mxu0 %v425
    %1020 = vmatprep.subr.mxu0 0.0
    %1021 = vmatpush1.msra.mxu0 %v430
    %1022 = vmatprep.subr.mxu0 0.0
    %1023 = vmatpush1.msra.mxu0 %v435
    %1024 = vmatprep.subr.mxu0 0.0
    %1025 = vmatpush1.msra.mxu0 %v440
    %1026 = vmatprep.subr.mxu0 0.0
    %1027 = vmatpush1.msra.mxu0 %v445
    %1028 = vmatprep.subr.mxu0 0.0
    %1029 = vmatpush1.msra.mxu0 %v450
    %1030 = vmatprep.subr.mxu0 0.0
    %1031 = vmatpush1.msra.mxu0 %v455
    %1032 = vmatprep.subr.mxu0 0.0
    %1033 = vmatpush1.msra.mxu0 %v460
    %1034 = vmatprep.subr.mxu0 0.0
    %1035 = vmatpush1.msra.mxu0 0.0
    %1036 = vmatprep.subr.mxu0 0.0
    %1037 = vmatpush1.msra.mxu0 0.0
    %1038 = vmatprep.subr.mxu0 0.0
    %1039 = vmatpush1.msra.mxu0 0.0
    %1040 = vmatprep.subr.mxu0 0.0
    %1041 = vmatpush1.msra.mxu0 0.0
    %1042 = vmatprep.subr.mxu0 0.0
    %1043 = vmatpush1.msra.mxu0 0.0
    %1044 = vmatprep.subr.mxu0 0.0
    %1045 = vmatpush1.msra.mxu0 0.0
    %1046 = vmatprep.subr.mxu0 0.0
    %1047 = vmatpush1.msra.mxu0 0.0
    %1048 = vmatprep.subr.mxu0 0.0
    %1049 = vmatpush1.msra.mxu0 0.0
    %1050 = vmatprep.subr.mxu0 0.0
    %1051 = vmatpush1.msra.mxu0 0.0
    %1052 = vmatprep.subr.mxu0 0.0
    %1053 = vmatpush1.msra.mxu0 0.0
    %1054 = vmatprep.subr.mxu0 0.0
    %1055 = vmatpush1.msra.mxu0 0.0
    %1056 = vmatprep.subr.mxu0 0.0
    %1057 = vmatpush1.msra.mxu0 0.0
    %1058 = vmatprep.subr.mxu0 0.0
    %1059 = vmatpush1.msra.mxu0 0.0
    %1060 = vmatprep.subr.mxu0 0.0
    %1061 = vmatpush1.msra.mxu0 0.0
    %1062 = vmatprep.subr.mxu0 0.0
    %1063 = vmatpush1.msra.mxu0 0.0
    %1064 = vmatprep.subr.mxu0 0.0
    %1065 = vmatpush1.msra.mxu0 0.0
    %1066 = vmatprep.mubr.f32.mxu0 0.0
    %1067 = vmatmul.mubr.f32.gmra.mrb[0].mxu0 %v349
    %v1068 = vpop.f32.mrb[0].mxu0
    %v1069 = vadd.f32 %v482, %v1068
    %v1070 = vpop.f32.mrb[0].mxu0
    %1071 = vmatprep.mubr.f32.mxu0 0.0
    %1072 = vmatmul.mubr.f32.gmra.mrb[0].mxu0 %v350
    %v1073 = vpop.f32.mrb[0].mxu0
    %v1074 = vadd.f32 %v482, %v1073
    %v1075 = vpop.f32.mrb[0].mxu0
    %1076 = vmatprep.mubr.f32.mxu0 0.0
    %1077 = vmatmul.mubr.f32.gmra.mrb[0].mxu0 %v351
    %v1078 = vpop.f32.mrb[0].mxu0
    %v1079 = vadd.f32 %v482, %v1078
    %v1080 = vpop.f32.mrb[0].mxu0
    %1081 = vmatprep.mubr.f32.mxu0 0.0
    %1082 = vmatmul.mubr.f32.gmra.mrb[0].mxu0 %v352
    %v1083 = vpop.f32.mrb[0].mxu0
    %v1084 = vadd.f32 %v482, %v1083
    %v1085 = vpop.f32.mrb[0].mxu0
    %1086 = vmatprep.mubr.f32.mxu0 0.0
    %1087 = vmatmul.mubr.f32.gmra.mrb[0].mxu0 %v353
    %v1088 = vpop.f32.mrb[0].mxu0
    %v1089 = vadd.f32 %v482, %v1088
    %v1090 = vpop.f32.mrb[0].mxu0
    %1091 = vmatprep.mubr.f32.mxu0 0.0
    %1092 = vmatmul.mubr.f32.gmra.mrb[0].mxu0 %v354
    %v1093 = vpop.f32.mrb[0].mxu0
    %v1094 = vadd.f32 %v482, %v1093
    %v1095 = vpop.f32.mrb[0].mxu0
    %1096 = vmatprep.mubr.f32.mxu0 0.0
    %1097 = vmatmul.mubr.f32.gmra.mrb[0].mxu0 %v355
    %v1098 = vpop.f32.mrb[0].mxu0
    %v1099 = vadd.f32 %v482, %v1098
    %v1100 = vpop.f32.mrb[0].mxu0
    %1101 = vmatprep.mubr.f32.mxu0 0.0
    %1102 = vmatmul.mubr.f32.gmra.mrb[0].mxu0 %v356
    %v1103 = vpop.f32.mrb[0].mxu0
    %v1104 = vadd.f32 %v482, %v1103
    %v1105 = vpop.f32.mrb[0].mxu0
    %1106 = vmatprep.mubr.f32.mxu0 0.0
    %1107 = vmatmul.mubr.f32.gmra.mrb[0].mxu0 %v357
    %v1108 = vpop.f32.mrb[0].mxu0
    %v1109 = vadd.f32 %v482, %v1108
    %v1110 = vpop.f32.mrb[0].mxu0
    %1111 = vmatprep.mubr.f32.mxu0 0.0
    %1112 = vmatmul.mubr.f32.gmra.mrb[0].mxu0 %v358
    %v1113 = vpop.f32.mrb[0].mxu0
    %v1114 = vadd.f32 %v482, %v1113
    %v1115 = vpop.f32.mrb[0].mxu0
    %1116 = vmatprep.mubr.f32.mxu0 0.0
    %1117 = vmatmul.mubr.f32.gmra.mrb[0].mxu0 %v359
    %v1118 = vpop.f32.mrb[0].mxu0
    %v1119 = vadd.f32 %v482, %v1118
    %v1120 = vpop.f32.mrb[0].mxu0
    %1121 = vmatprep.mubr.f32.mxu0 0.0
    %1122 = vmatmul.mubr.f32.gmra.mrb[0].mxu0 %v360
    %v1123 = vpop.f32.mrb[0].mxu0
    %v1124 = vadd.f32 %v482, %v1123
    %v1125 = vpop.f32.mrb[0].mxu0
    %1126 = vmatprep.mubr.f32.mxu0 0.0
    %1127 = vmatmul.mubr.f32.gmra.mrb[0].mxu0 %v361
    %v1128 = vpop.f32.mrb[0].mxu0
    %v1129 = vadd.f32 %v482, %v1128
    %v1130 = vpop.f32.mrb[0].mxu0
    %1131 = vmatprep.mubr.f32.mxu0 0.0
    %1132 = vmatmul.mubr.f32.gmra.mrb[0].mxu0 %v362
    %v1133 = vpop.f32.mrb[0].mxu0
    %v1134 = vadd.f32 %v482, %v1133
    %v1135 = vpop.f32.mrb[0].mxu0
    %1136 = vmatprep.mubr.f32.mxu0 0.0
    %1137 = vmatmul.mubr.f32.gmra.mrb[0].mxu0 %v363
    %v1138 = vpop.f32.mrb[0].mxu0
    %v1139 = vadd.f32 %v482, %v1138
    %v1140 = vpop.f32.mrb[0].mxu0
    %1141 = vmatprep.mubr.f32.mxu0 0.0
    %1142 = vmatmul.mubr.f32.gmra.mrb[0].mxu0 %v364
    %v1143 = vpop.f32.mrb[0].mxu0
    %v1144 = vadd.f32 %v482, %v1143
    %v1145 = vpop.f32.mrb[0].mxu0
    %1146 = vmatprep.mubr.f32.mxu0 0.0
    %1147 = vmatmul.mubr.f32.gmra.mrb[0].mxu0 %v365
    %v1148 = vpop.f32.mrb[0].mxu0
    %v1149 = vadd.f32 %v482, %v1148
    %v1150 = vpop.f32.mrb[0].mxu0
    %1151 = vmatprep.mubr.f32.mxu0 0.0
    %1152 = vmatmul.mubr.f32.gmra.mrb[0].mxu0 %v366
    %v1153 = vpop.f32.mrb[0].mxu0
    %v1154 = vadd.f32 %v482, %v1153
    %v1155 = vpop.f32.mrb[0].mxu0
    %1156 = vmatprep.mubr.f32.mxu0 0.0
    %1157 = vmatmul.mubr.f32.gmra.mrb[0].mxu0 %v367
    %v1158 = vpop.f32.mrb[0].mxu0
    %v1159 = vadd.f32 %v482, %v1158
    %v1160 = vpop.f32.mrb[0].mxu0
    %1161 = vmatprep.mubr.f32.mxu0 0.0
    %1162 = vmatmul.mubr.f32.gmra.mrb[0].mxu0 %v368
    %v1163 = vpop.f32.mrb[0].mxu0
    %v1164 = vadd.f32 %v482, %v1163
    %v1165 = vpop.f32.mrb[0].mxu0
    %1166 = vmatprep.mubr.f32.mxu0 0.0
    %1167 = vmatmul.mubr.f32.gmra.mrb[0].mxu0 %v369
    %v1168 = vpop.f32.mrb[0].mxu0
    %v1169 = vadd.f32 %v482, %v1168
    %v1170 = vpop.f32.mrb[0].mxu0
    %1171 = vmatprep.mubr.f32.mxu0 0.0
    %1172 = vmatmul.mubr.f32.gmra.mrb[0].mxu0 %v370
    %v1173 = vpop.f32.mrb[0].mxu0
    %v1174 = vadd.f32 %v482, %v1173
    %v1175 = vpop.f32.mrb[0].mxu0
    %1176 = vmatprep.mubr.f32.mxu0 0.0
    %1177 = vmatmul.mubr.f32.gmra.mrb[0].mxu0 %v371
    %v1178 = vpop.f32.mrb[0].mxu0
    %v1179 = vadd.f32 %v482, %v1178
    %v1180 = vpop.f32.mrb[0].mxu0
    %1181 = vmatprep.mubr.f32.mxu0 0.0
    %1182 = vmatmul.mubr.f32.gmra.mrb[0].mxu0 %v372
    %v1183 = vpop.f32.mrb[0].mxu0
    %v1184 = vadd.f32 %v482, %v1183
    %v1185 = vpop.f32.mrb[0].mxu0
    %1186 = vmatprep.mubr.f32.mxu0 0.0
    %1187 = vmatmul.mubr.f32.gmra.mrb[0].mxu0 %v373
    %v1188 = vpop.f32.mrb[0].mxu0
    %v1189 = vadd.f32 %v482, %v1188
    %v1190 = vpop.f32.mrb[0].mxu0
    %1191 = vmatprep.mubr.f32.mxu0 0.0
    %1192 = vmatmul.mubr.f32.gmra.mrb[0].mxu0 %v374
    %v1193 = vpop.f32.mrb[0].mxu0
    %v1194 = vadd.f32 %v482, %v1193
    %v1195 = vpop.f32.mrb[0].mxu0
    %1196 = vmatprep.mubr.f32.mxu0 0.0
    %1197 = vmatmul.mubr.f32.gmra.mrb[0].mxu0 %v375
    %v1198 = vpop.f32.mrb[0].mxu0
    %v1199 = vadd.f32 %v482, %v1198
    %v1200 = vpop.f32.mrb[0].mxu0
    %1201 = vmatprep.mubr.f32.mxu0 0.0
    %1202 = vmatmul.mubr.f32.gmra.mrb[0].mxu0 %v376
    %v1203 = vpop.f32.mrb[0].mxu0
    %v1204 = vadd.f32 %v482, %v1203
    %v1205 = vpop.f32.mrb[0].mxu0
    %1206 = vmatprep.mubr.f32.mxu0 0.0
    %1207 = vmatmul.mubr.f32.gmra.mrb[0].mxu0 %v377
    %v1208 = vpop.f32.mrb[0].mxu0
    %v1209 = vadd.f32 %v482, %v1208
    %v1210 = vpop.f32.mrb[0].mxu0
    %1211 = vmatprep.mubr.f32.mxu0 0.0
    %1212 = vmatmul.mubr.f32.gmra.mrb[0].mxu0 %v378
    %v1213 = vpop.f32.mrb[0].mxu0
    %v1214 = vadd.f32 %v482, %v1213
    %v1215 = vpop.f32.mrb[0].mxu0
    %1216 = vmatprep.mubr.f32.mxu0 0.0
    %1217 = vmatmul.mubr.f32.gmra.mrb[0].mxu0 %v379
    %v1218 = vpop.f32.mrb[0].mxu0
    %v1219 = vadd.f32 %v482, %v1218
    %v1220 = vpop.f32.mrb[0].mxu0
    %1221 = vmatprep.mubr.f32.mxu0 0.0
    %1222 = vmatmul.mubr.f32.gmra.mrb[0].mxu0 %v380
    %v1223 = vpop.f32.mrb[0].mxu0
    %v1224 = vadd.f32 %v482, %v1223
    %v1225 = vpop.f32.mrb[0].mxu0
    %1226 = vdwg.mxu0
    %1227 = vst [vmem:[#allocation9] sm:$0xff] %v555
    %1228 = vst [vmem:[#allocation9 + $0x8] sm:$0xff] %v557
    %1229 = vst [vmem:[#allocation9 + $0x10] sm:$0xff] %v812
    %1230 = vst [vmem:[#allocation9 + $0x18] sm:$0xff] %v814
    %1231 = vst [vmem:[#allocation9 + $0x20] sm:$0xff] %v561
    %1232 = vst [vmem:[#allocation9 + $0x28] sm:$0xff] %v563
    %1233 = vst [vmem:[#allocation9 + $0x30] sm:$0xff] %v818
    %1234 = vst [vmem:[#allocation9 + $0x38] sm:$0xff] %v820
    %1235 = vst [vmem:[#allocation9 + $0x40] sm:$0xff] %v567
    %1236 = vst [vmem:[#allocation9 + $0x48] sm:$0xff] %v569
    %1237 = vst [vmem:[#allocation9 + $0x50] sm:$0xff] %v824
    %1238 = vst [vmem:[#allocation9 + $0x58] sm:$0xff] %v826
    %1239 = vst [vmem:[#allocation9 + $0x60] sm:$0xff] %v573
    %1240 = vst [vmem:[#allocation9 + $0x68] sm:$0xff] %v575
    %1241 = vst [vmem:[#allocation9 + $0x70] sm:$0xff] %v830
    %1242 = vst [vmem:[#allocation9 + $0x78] sm:$0xff] %v832
    %1243 = vst [vmem:[#allocation9 + $0x80] sm:$0xff] %v579
    %1244 = vst [vmem:[#allocation9 + $0x88] sm:$0xff] %v581
    %1245 = vst [vmem:[#allocation9 + $0x90] sm:$0xff] %v836
    %1246 = vst [vmem:[#allocation9 + $0x98] sm:$0xff] %v838
    %1247 = vst [vmem:[#allocation9 + $0xa0] sm:$0xff] %v585
    %1248 = vst [vmem:[#allocation9 + $0xa8] sm:$0xff] %v587
    %1249 = vst [vmem:[#allocation9 + $0xb0] sm:$0xff] %v842
    %1250 = vst [vmem:[#allocation9 + $0xb8] sm:$0xff] %v844
    %1251 = vst [vmem:[#allocation9 + $0xc0] sm:$0xff] %v591
    %1252 = vst [vmem:[#allocation9 + $0xc8] sm:$0xff] %v593
    %1253 = vst [vmem:[#allocation9 + $0xd0] sm:$0xff] %v848
    %1254 = vst [vmem:[#allocation9 + $0xd8] sm:$0xff] %v850
    %1255 = vst [vmem:[#allocation9 + $0xe0] sm:$0xff] %v597
    %1256 = vst [vmem:[#allocation9 + $0xe8] sm:$0xff] %v599
    %1257 = vst [vmem:[#allocation9 + $0xf0] sm:$0xff] %v854
    %1258 = vst [vmem:[#allocation9 + $0xf8] sm:$0xff] %v856
    %1259 = vst [vmem:[#allocation9 + $0x100] sm:$0xff] %v603
    %1260 = vst [vmem:[#allocation9 + $0x108] sm:$0xff] %v605
    %1261 = vst [vmem:[#allocation9 + $0x110] sm:$0xff] %v860
    %1262 = vst [vmem:[#allocation9 + $0x118] sm:$0xff] %v862
    %1263 = vst [vmem:[#allocation9 + $0x120] sm:$0xff] %v609
    %1264 = vst [vmem:[#allocation9 + $0x128] sm:$0xff] %v611
    %1265 = vst [vmem:[#allocation9 + $0x130] sm:$0xff] %v866
    %1266 = vst [vmem:[#allocation9 + $0x138] sm:$0xff] %v868
    %1267 = vst [vmem:[#allocation9 + $0x140] sm:$0xff] %v615
    %1268 = vst [vmem:[#allocation9 + $0x148] sm:$0xff] %v617
    %1269 = vst [vmem:[#allocation9 + $0x150] sm:$0xff] %v872
    %1270 = vst [vmem:[#allocation9 + $0x158] sm:$0xff] %v874
    %1271 = vst [vmem:[#allocation9 + $0x160] sm:$0xff] %v621
    %1272 = vst [vmem:[#allocation9 + $0x168] sm:$0xff] %v623
    %1273 = vst [vmem:[#allocation9 + $0x170] sm:$0xff] %v878
    %1274 = vst [vmem:[#allocation9 + $0x178] sm:$0xff] %v880
    %1275 = vst [vmem:[#allocation9 + $0x180] sm:$0xff] %v627
    %1276 = vst [vmem:[#allocation9 + $0x188] sm:$0xff] %v629
    %1277 = vst [vmem:[#allocation9 + $0x190] sm:$0xff] %v884
    %1278 = vst [vmem:[#allocation9 + $0x198] sm:$0xff] %v886
    %1279 = vst [vmem:[#allocation9 + $0x1a0] sm:$0xff] %v633
    %1280 = vst [vmem:[#allocation9 + $0x1a8] sm:$0xff] %v635
    %1281 = vst [vmem:[#allocation9 + $0x1b0] sm:$0xff] %v890
    %1282 = vst [vmem:[#allocation9 + $0x1b8] sm:$0xff] %v892
    %1283 = vst [vmem:[#allocation9 + $0x1c0] sm:$0xff] %v639
    %1284 = vst [vmem:[#allocation9 + $0x1c8] sm:$0xff] %v641
    %1285 = vst [vmem:[#allocation9 + $0x1d0] sm:$0xff] %v896
    %1286 = vst [vmem:[#allocation9 + $0x1d8] sm:$0xff] %v898
    %1287 = vst [vmem:[#allocation9 + $0x1e0] sm:$0xff] %v645
    %1288 = vst [vmem:[#allocation9 + $0x1e8] sm:$0xff] %v647
    %1289 = vst [vmem:[#allocation9 + $0x1f0] sm:$0xff] %v902
    %1290 = vst [vmem:[#allocation9 + $0x1f8] sm:$0xff] %v904
    %1291 = vst [vmem:[#allocation9 + $0x200] sm:$0xff] %v651
    %1292 = vst [vmem:[#allocation9 + $0x208] sm:$0xff] %v653
    %1293 = vst [vmem:[#allocation9 + $0x210] sm:$0xff] %v908
    %1294 = vst [vmem:[#allocation9 + $0x218] sm:$0xff] %v910
    %1295 = vst [vmem:[#allocation9 + $0x220] sm:$0xff] %v657
    %1296 = vst [vmem:[#allocation9 + $0x228] sm:$0xff] %v659
    %1297 = vst [vmem:[#allocation9 + $0x230] sm:$0xff] %v914
    %1298 = vst [vmem:[#allocation9 + $0x238] sm:$0xff] %v916
    %1299 = vst [vmem:[#allocation9 + $0x240] sm:$0xff] %v663
    %1300 = vst [vmem:[#allocation9 + $0x248] sm:$0xff] %v665
    %1301 = vst [vmem:[#allocation9 + $0x250] sm:$0xff] %v920
    %1302 = vst [vmem:[#allocation9 + $0x258] sm:$0xff] %v922
    %1303 = vst [vmem:[#allocation9 + $0x260] sm:$0xff] %v669
    %1304 = vst [vmem:[#allocation9 + $0x268] sm:$0xff] %v671
    %1305 = vst [vmem:[#allocation9 + $0x270] sm:$0xff] %v926
    %1306 = vst [vmem:[#allocation9 + $0x278] sm:$0xff] %v928
    %1307 = vst [vmem:[#allocation9 + $0x280] sm:$0xff] %v675
    %1308 = vst [vmem:[#allocation9 + $0x288] sm:$0xff] %v677
    %1309 = vst [vmem:[#allocation9 + $0x290] sm:$0xff] %v932
    %1310 = vst [vmem:[#allocation9 + $0x298] sm:$0xff] %v934
    %1311 = vst [vmem:[#allocation9 + $0x2a0] sm:$0xff] %v681
    %1312 = vst [vmem:[#allocation9 + $0x2a8] sm:$0xff] %v683
    %1313 = vst [vmem:[#allocation9 + $0x2b0] sm:$0xff] %v938
    %1314 = vst [vmem:[#allocation9 + $0x2b8] sm:$0xff] %v940
    %1315 = vst [vmem:[#allocation9 + $0x2c0] sm:$0xff] %v687
    %1316 = vst [vmem:[#allocation9 + $0x2c8] sm:$0xff] %v689
    %1317 = vst [vmem:[#allocation9 + $0x2d0] sm:$0xff] %v944
    %1318 = vst [vmem:[#allocation9 + $0x2d8] sm:$0xff] %v946
    %1319 = vst [vmem:[#allocation9 + $0x2e0] sm:$0xff] %v693
    %1320 = vst [vmem:[#allocation9 + $0x2e8] sm:$0xff] %v695
    %1321 = vst [vmem:[#allocation9 + $0x2f0] sm:$0xff] %v950
    %1322 = vst [vmem:[#allocation9 + $0x2f8] sm:$0xff] %v952
    %1323 = vst [vmem:[#allocation9 + $0x300] sm:$0xff] %v699
    %1324 = vst [vmem:[#allocation9 + $0x308] sm:$0xff] %v701
    %1325 = vst [vmem:[#allocation9 + $0x310] sm:$0xff] %v956
    %1326 = vst [vmem:[#allocation9 + $0x318] sm:$0xff] %v958
    %1327 = vst [vmem:[#allocation9 + $0x320] sm:$0xff] %v705
    %1328 = vst [vmem:[#allocation9 + $0x328] sm:$0xff] %v707
    %1329 = vst [vmem:[#allocation9 + $0x330] sm:$0xff] %v962
    %1330 = vst [vmem:[#allocation9 + $0x338] sm:$0xff] %v964
    %1331 = vst [vmem:[#allocation9 + $0x340] sm:$0xff] %v711
    %1332 = vst [vmem:[#allocation9 + $0x348] sm:$0xff] %v713
    %1333 = vst [vmem:[#allocation9 + $0x350] sm:$0xff] %v968
    %1334 = vst [vmem:[#allocation9 + $0x358] sm:$0xff] %v970
    %1335 = vst [vmem:[#allocation9 + $0x360] sm:$0xff] %v717
    %1336 = vst [vmem:[#allocation9 + $0x368] sm:$0xff] %v719
    %1337 = vst [vmem:[#allocation9 + $0x370] sm:$0xff] %v974
    %1338 = vst [vmem:[#allocation9 + $0x378] sm:$0xff] %v976
    %1339 = vst [vmem:[#allocation9 + $0x380] sm:$0xff] %v723
    %1340 = vst [vmem:[#allocation9 + $0x388] sm:$0xff] %v725
    %1341 = vst [vmem:[#allocation9 + $0x390] sm:$0xff] %v980
    %1342 = vst [vmem:[#allocation9 + $0x398] sm:$0xff] %v982
    %1343 = vst [vmem:[#allocation9 + $0x3a0] sm:$0xff] %v729
    %1344 = vst [vmem:[#allocation9 + $0x3a8] sm:$0xff] %v731
    %1345 = vst [vmem:[#allocation9 + $0x3b0] sm:$0xff] %v986
    %1346 = vst [vmem:[#allocation9 + $0x3b8] sm:$0xff] %v988
    %1347 = vst [vmem:[#allocation9 + $0x3c0] sm:$0xff] %v735
    %1348 = vst [vmem:[#allocation9 + $0x3c8] sm:$0xff] %v737
    %1349 = vst [vmem:[#allocation9 + $0x3d0] sm:$0xff] %v992
    %1350 = vst [vmem:[#allocation9 + $0x3d8] sm:$0xff] %v994
    %1351 = vst [vmem:[#allocation9 + $0x3e0] sm:$0xff] %v741
    %1352 = vst [vmem:[#allocation9 + $0x3e8] sm:$0xff] %v743
    %1353 = vst [vmem:[#allocation9 + $0x3f0] sm:$0xff] %v998
    %1354 = vst [vmem:[#allocation9 + $0x3f8] sm:$0xff] %v1000
    %s1355 = sld [smem:[#allocation2]]
    %v1356 = vstv %s1355
    %vm1357 = vcmp.gt.f32.partialorder %v1069, %v1356
    %vm1358 = vcmp.gt.f32.partialorder %v1074, %v1356
    %vm1359 = vcmp.gt.f32.partialorder %v1079, %v1356
    %vm1360 = vcmp.gt.f32.partialorder %v1084, %v1356
    %vm1361 = vcmp.gt.f32.partialorder %v1089, %v1356
    %vm1362 = vcmp.gt.f32.partialorder %v1094, %v1356
    %vm1363 = vcmp.gt.f32.partialorder %v1099, %v1356
    %vm1364 = vcmp.gt.f32.partialorder %v1104, %v1356
    %vm1365 = vcmp.gt.f32.partialorder %v1109, %v1356
    %vm1366 = vcmp.gt.f32.partialorder %v1114, %v1356
    %vm1367 = vcmp.gt.f32.partialorder %v1119, %v1356
    %vm1368 = vcmp.gt.f32.partialorder %v1124, %v1356
    %vm1369 = vcmp.gt.f32.partialorder %v1129, %v1356
    %vm1370 = vcmp.gt.f32.partialorder %v1134, %v1356
    %vm1371 = vcmp.gt.f32.partialorder %v1139, %v1356
    %vm1372 = vcmp.gt.f32.partialorder %v1144, %v1356
    %vm1373 = vcmp.gt.f32.partialorder %v1149, %v1356
    %vm1374 = vcmp.gt.f32.partialorder %v1154, %v1356
    %vm1375 = vcmp.gt.f32.partialorder %v1159, %v1356
    %vm1376 = vcmp.gt.f32.partialorder %v1164, %v1356
    %vm1377 = vcmp.gt.f32.partialorder %v1169, %v1356
    %vm1378 = vcmp.gt.f32.partialorder %v1174, %v1356
    %vm1379 = vcmp.gt.f32.partialorder %v1179, %v1356
    %vm1380 = vcmp.gt.f32.partialorder %v1184, %v1356
    %vm1381 = vcmp.gt.f32.partialorder %v1189, %v1356
    %vm1382 = vcmp.gt.f32.partialorder %v1194, %v1356
    %vm1383 = vcmp.gt.f32.partialorder %v1199, %v1356
    %vm1384 = vcmp.gt.f32.partialorder %v1204, %v1356
    %vm1385 = vcmp.gt.f32.partialorder %v1209, %v1356
    %vm1386 = vcmp.gt.f32.partialorder %v1214, %v1356
    %vm1387 = vcmp.gt.f32.partialorder %v1219, %v1356
    %vm1388 = vcmp.gt.f32.partialorder %v1224, %v1356
    %v1389 = vsel %vm1357, 1.0, 0.0
    %v1390 = vsel %vm1358, 1.0, 0.0
    %v1391 = vsel %vm1359, 1.0, 0.0
    %v1392 = vsel %vm1360, 1.0, 0.0
    %v1393 = vsel %vm1361, 1.0, 0.0
    %v1394 = vsel %vm1362, 1.0, 0.0
    %v1395 = vsel %vm1363, 1.0, 0.0
    %v1396 = vsel %vm1364, 1.0, 0.0
    %v1397 = vsel %vm1365, 1.0, 0.0
    %v1398 = vsel %vm1366, 1.0, 0.0
    %v1399 = vsel %vm1367, 1.0, 0.0
    %v1400 = vsel %vm1368, 1.0, 0.0
    %v1401 = vsel %vm1369, 1.0, 0.0
    %v1402 = vsel %vm1370, 1.0, 0.0
    %v1403 = vsel %vm1371, 1.0, 0.0
    %v1404 = vsel %vm1372, 1.0, 0.0
    %v1405 = vsel %vm1373, 1.0, 0.0
    %v1406 = vsel %vm1374, 1.0, 0.0
    %v1407 = vsel %vm1375, 1.0, 0.0
    %v1408 = vsel %vm1376, 1.0, 0.0
    %v1409 = vsel %vm1377, 1.0, 0.0
    %v1410 = vsel %vm1378, 1.0, 0.0
    %v1411 = vsel %vm1379, 1.0, 0.0
    %v1412 = vsel %vm1380, 1.0, 0.0
    %v1413 = vsel %vm1381, 1.0, 0.0
    %v1414 = vsel %vm1382, 1.0, 0.0
    %v1415 = vsel %vm1383, 1.0, 0.0
    %v1416 = vsel %vm1384, 1.0, 0.0
    %v1417 = vsel %vm1385, 1.0, 0.0
    %v1418 = vsel %vm1386, 1.0, 0.0
    %v1419 = vsel %vm1387, 1.0, 0.0
    %v1420 = vsel %vm1388, 1.0, 0.0
    %1421 = vst [vmem:[#allocation10] sm:$0xff] %v1389
    %1422 = vst [vmem:[#allocation10 + $0x8] sm:$0xff] %v1390
    %1423 = vst [vmem:[#allocation10 + $0x10] sm:$0xff] %v1391
    %1424 = vst [vmem:[#allocation10 + $0x18] sm:$0xff] %v1392
    %1425 = vst [vmem:[#allocation10 + $0x20] sm:$0xff] %v1393
    %1426 = vst [vmem:[#allocation10 + $0x28] sm:$0xff] %v1394
    %1427 = vst [vmem:[#allocation10 + $0x30] sm:$0xff] %v1395
    %1428 = vst [vmem:[#allocation10 + $0x38] sm:$0xff] %v1396
    %1429 = vst [vmem:[#allocation10 + $0x40] sm:$0xff] %v1397
    %1430 = vst [vmem:[#allocation10 + $0x48] sm:$0xff] %v1398
    %1431 = vst [vmem:[#allocation10 + $0x50] sm:$0xff] %v1399
    %1432 = vst [vmem:[#allocation10 + $0x58] sm:$0xff] %v1400
    %1433 = vst [vmem:[#allocation10 + $0x60] sm:$0xff] %v1401
    %1434 = vst [vmem:[#allocation10 + $0x68] sm:$0xff] %v1402
    %1435 = vst [vmem:[#allocation10 + $0x70] sm:$0xff] %v1403
    %1436 = vst [vmem:[#allocation10 + $0x78] sm:$0xff] %v1404
    %1437 = vst [vmem:[#allocation10 + $0x80] sm:$0xff] %v1405
    %1438 = vst [vmem:[#allocation10 + $0x88] sm:$0xff] %v1406
    %1439 = vst [vmem:[#allocation10 + $0x90] sm:$0xff] %v1407
    %1440 = vst [vmem:[#allocation10 + $0x98] sm:$0xff] %v1408
    %1441 = vst [vmem:[#allocation10 + $0xa0] sm:$0xff] %v1409
    %1442 = vst [vmem:[#allocation10 + $0xa8] sm:$0xff] %v1410
    %1443 = vst [vmem:[#allocation10 + $0xb0] sm:$0xff] %v1411
    %1444 = vst [vmem:[#allocation10 + $0xb8] sm:$0xff] %v1412
    %1445 = vst [vmem:[#allocation10 + $0xc0] sm:$0xff] %v1413
    %1446 = vst [vmem:[#allocation10 + $0xc8] sm:$0xff] %v1414
    %1447 = vst [vmem:[#allocation10 + $0xd0] sm:$0xff] %v1415
    %1448 = vst [vmem:[#allocation10 + $0xd8] sm:$0xff] %v1416
    %1449 = vst [vmem:[#allocation10 + $0xe0] sm:$0xff] %v1417
    %1450 = vst [vmem:[#allocation10 + $0xe8] sm:$0xff] %v1418
    %1451 = vst [vmem:[#allocation10 + $0xf0] sm:$0xff] %v1419
    %1452 = vst [vmem:[#allocation10 + $0xf8] sm:$0xff] %v1420
    // Predicated region
    $region38: #{tpu_custom_call.1} parent=1 // pred_check
      _
    $region39: #{tpu_custom_call.1} parent=1 // pred_check_branch
      %1454 = sbr.rel (0) target = $region41
    $region40: #{tpu_custom_call.1} parent=1 // pred_region
      %s1456 = ssub.s32 16384, 16384
      %1457 = vsyncadd [#allocation5], %s1456
      %s1458 = sshll.u32 [#allocation9], 4
      %s1459 = int_to_ptr.vmem [resolvable:$true] %s1458
      %1464 = dma.vmem_to_hbm [thread:$0]  %s1459, 16384, %s6, [#allocation5], 512, 512, 32
    $region41: #{tpu_custom_call.1} parent=1 // pred_fallthru
      _
    // Predicated region
    $region42: #{tpu_custom_call.1} parent=1 // pred_check
      _
    $region43: #{tpu_custom_call.1} parent=1 // pred_check_branch
      %1466 = sbr.rel (0) target = $region45
    $region44: #{tpu_custom_call.1} parent=1 // pred_region
      %s1468 = ssub.s32 4096, 4096
      %1469 = vsyncadd [#allocation11], %s1468
      %s1470 = sshll.u32 [#allocation10], 4
      %s1471 = int_to_ptr.vmem [resolvable:$true] %s1470
      %1476 = dma.vmem_to_hbm [thread:$0]  %s1471, 4096, %s7, [#allocation11], 128, 128, 8
    $region45: #{tpu_custom_call.1} parent=1 // pred_fallthru
      _
    // Predicated region
    $region46: #{tpu_custom_call.1} parent=1 // pred_check
      _
    $region47: #{tpu_custom_call.1} parent=1 // pred_check_branch
      %1478 = sbr.rel (0) target = $region49
    $region48: #{tpu_custom_call.1} parent=1 // pred_region
      %1479 = dma.done [#allocation5], 16384
    $region49: #{tpu_custom_call.1} parent=1 // pred_fallthru
      _
    // Predicated region
    $region50: #{tpu_custom_call.1} parent=1 // pred_check
      _
    $region51: #{tpu_custom_call.1} parent=1 // pred_check_branch
      %1481 = sbr.rel (0) target = $region53
    $region52: #{tpu_custom_call.1} parent=1 // pred_region
      %1482 = dma.done [#allocation11], 4096
    $region53: #{tpu_custom_call.1} parent=1 // pred_fallthru
      _
    %1483 = vsyncpa [#allocation4], 1
    %1484 = vsyncpa [#allocation7], 1
    %1485 = vsyncpa [#allocation5], 1
    %1486 = vsyncpa [#allocation11], 1

</llo_original>
